<compile_context>
chip_gen: v7x
topology: tpu7x:2x2x1
jax: 0.10.0
libtpu: 0.0.40
codegen_flags: <defaults>
</compile_context>

<pallas_src>
import functools

import jax
import jax.numpy as jnp
from jax.experimental import pallas as pl
from jax.experimental.pallas import tpu as pltpu


# ------------------------------ fused kernel -------------------------------

def _fused_kernel(x_ref, w_exp_ref, t1_ref, w_dw_ref, mask_ref, t2_ref,
                  w_proj_ref, t3_ref, w_fc1_ref, b_fc1_ref, w_fc2_ref, b_fc2_ref,
                  o_ref, *, H, W, add_residual):
    HW = H * W
    x = x_ref[0]                                                   # (cin, H*W)

    # ---- expand 1x1 conv (BN scale folded into rows) + shift + ReLU6 ----
    h = jnp.dot(w_exp_ref[...], x, preferred_element_type=jnp.float32)
    h = jnp.clip(h + t1_ref[...], 0.0, 6.0)                        # (hidden, H*W)

    # ---- depthwise 3x3: lane rolls (XLU) + edge masks; no halo scratch ----
    acc = h * w_dw_ref[4]                                          # center tap: no shift/mask
    for kh in range(3):
        for kw in range(3):
            k = kh * 3 + kw
            if k == 4:
                continue
            s = (kh - 1) * W + (kw - 1)                            # flat-spatial source offset
            rolled = pltpu.roll(h, (-s) % HW, 1)                   # rolled[:, p] = h[:, (p+s) % HW]
            acc = acc + (rolled * mask_ref[k]) * w_dw_ref[k]
    h2 = jnp.clip(acc + t2_ref[...], 0.0, 6.0)                     # (hidden, H*W)

    # ---- project 1x1 conv (BN scale folded) + shift (linear) ----
    out = jnp.dot(w_proj_ref[...], h2, preferred_element_type=jnp.float32)
    out = out + t3_ref[...]                                        # (oup, H*W)

    # ---- squeeze-and-excite on VPU/XLU/EUP (kept off the MXU) ----
    pooled = jnp.sum(out, axis=1, keepdims=True) * (1.0 / HW)      # (oup, 1) lane reduce
    se = jnp.sum(w_fc1_ref[...] * pooled, axis=0, keepdims=True) + b_fc1_ref[...]   # (1, red)
    se = jnp.clip(se, 0.0, 6.0)
    gate = jnp.sum(w_fc2_ref[...] * se, axis=1, keepdims=True) + b_fc2_ref[...]     # (oup, 1)
    gate = jax.nn.sigmoid(gate)                                    # EUP

    y = out * gate
    if add_residual:
        y = y + x
    o_ref[0] = y                                                   # lane-dense (oup, H*W) store


# ------------------------------ forward glue -------------------------------

def inverted_residual_forward(x, p, *, stride=1):
    assert stride == 1, "TODO(synk): stride=2 depthwise path not implemented"
    N, cin, H, W = x.shape
    hidden = p["w_exp"].shape[0]
    oup = p["w_proj"].shape[0]
    red = p["fc1_w"].shape[0]
    HW = H * W
    use_res = (stride == 1) and (cin == oup)

    # Pre-fold BN scales into conv weights (scale is per *output* channel = weight rows):
    #   (w @ x) * s + t  ==  (w * s[:, None]) @ x + t
    w_exp = p["w_exp"] * p["s1"][:, None]                                  # (hidden, cin)
    w_dw = (p["w_dw"] * p["s2"][:, None, None]).reshape(hidden, 9)         # (hidden, 9)
    w_dw = jnp.transpose(w_dw, (1, 0))[:, :, None]                         # (9, hidden, 1)
    w_proj = p["w_proj"] * p["s3"][:, None]                                # (oup, hidden)

    # Per-tap edge-validity masks over the flattened spatial axis (computed once, tiny).
    pos = jnp.arange(HW, dtype=jnp.int32)
    hh, ww = pos // W, pos % W
    masks = []
    for kh in range(3):
        for kw in range(3):
            dh, dw = kh - 1, kw - 1
            valid = (hh + dh >= 0) & (hh + dh < H) & (ww + dw >= 0) & (ww + dw < W)
            masks.append(valid.astype(jnp.float32))
    masks = jnp.stack(masks, axis=0).reshape(9, 1, HW)

    x_cf = x.reshape(N, cin, HW)                                           # channels-first, flat spatial

    kern = functools.partial(_fused_kernel, H=H, W=W, add_residual=use_res)
    out = pl.pallas_call(
        kern,
        out_shape=jax.ShapeDtypeStruct((N, oup, HW), jnp.float32),
        grid_spec=pltpu.PrefetchScalarGridSpec(
            num_scalar_prefetch=0,
            grid=(N,),
            in_specs=[
                pl.BlockSpec((1, cin, HW), lambda b: (b, 0, 0)),      # x (channels-first)
                pl.BlockSpec((hidden, cin), lambda b: (0, 0)),        # w_exp (BN folded)
                pl.BlockSpec((hidden, 1), lambda b: (0, 0)),          # t1
                pl.BlockSpec((9, hidden, 1), lambda b: (0, 0, 0)),    # depthwise taps (BN folded)
                pl.BlockSpec((9, 1, HW), lambda b: (0, 0, 0)),        # edge masks
                pl.BlockSpec((hidden, 1), lambda b: (0, 0)),          # t2
                pl.BlockSpec((oup, hidden), lambda b: (0, 0)),        # w_proj (BN folded)
                pl.BlockSpec((oup, 1), lambda b: (0, 0)),             # t3
                pl.BlockSpec((oup, red), lambda b: (0, 0)),           # fc1.weight^T
                pl.BlockSpec((1, red), lambda b: (0, 0)),             # fc1.bias
                pl.BlockSpec((oup, red), lambda b: (0, 0)),           # fc2.weight
                pl.BlockSpec((oup, 1), lambda b: (0, 0)),             # fc2.bias
            ],
            out_specs=pl.BlockSpec((1, oup, HW), lambda b: (b, 0, 0)),
        ),
        compiler_params=pltpu.CompilerParams(dimension_semantics=("parallel",)),
    )(
        x_cf,
        w_exp, p["t1"][:, None],
        w_dw, masks, p["t2"][:, None],
        w_proj, p["t3"][:, None],
        jnp.transpose(p["fc1_w"], (1, 0)), p["fc1_b"][None, :],
        p["fc2_w"], p["fc2_b"][:, None],
    )
    return out.reshape(N, oup, H, W)


# ------------------------------ reference ----------------------------------

def ref_forward(x, p, *, stride=1):
    N, cin, H, W = x.shape
    h = jnp.einsum("oc,nchw->nohw", p["w_exp"], x)
    h = jnp.clip(h * p["s1"][None, :, None, None] + p["t1"][None, :, None, None], 0.0, 6.0)
    hp = jnp.pad(h, ((0, 0), (0, 0), (1, 1), (1, 1)))
    acc = jnp.zeros_like(h)
    for kh in range(3):
        for kw in range(3):
            wkk = p["w_dw"][:, kh, kw][None, :, None, None]
            acc = acc + hp[:, :, kh:kh + H, kw:kw + W] * wkk
    h2 = jnp.clip(acc * p["s2"][None, :, None, None] + p["t2"][None, :, None, None], 0.0, 6.0)
    out = jnp.einsum("oc,nchw->nohw", p["w_proj"], h2)
    out = out * p["s3"][None, :, None, None] + p["t3"][None, :, None, None]
    pooled = out.mean(axis=(2, 3))                                      # (N, oup)
    se = jnp.clip(pooled @ p["fc1_w"].T + p["fc1_b"], 0.0, 6.0)         # (N, red)
    gate = jax.nn.sigmoid(se @ p["fc2_w"].T + p["fc2_b"])               # (N, oup)
    y = out * gate[:, :, None, None]
    oup = p["w_proj"].shape[0]
    if stride == 1 and cin == oup:
        y = y + x
    return y


def bn_fold(gamma, beta, mean, var, eps=1e-5):
    scale = gamma / jnp.sqrt(var + eps)
    return scale, beta - mean * scale


def make_params(key, inp, oup, expand_ratio):
    hidden = int(round(inp * expand_ratio))
    red = oup // 4
    ks = jax.random.split(key, 12)

    def bn(k, c):
        k1, k2, k3, k4 = jax.random.split(k, 4)
        gamma = 0.5 + jax.random.uniform(k1, (c,), jnp.float32)
        beta = 0.1 * jax.random.normal(k2, (c,), jnp.float32)
        mean = 0.1 * jax.random.normal(k3, (c,), jnp.float32)
        var = 0.5 + jax.random.uniform(k4, (c,), jnp.float32)
        return bn_fold(gamma, beta, mean, var)

    s1, t1 = bn(ks[0], hidden)
    s2, t2 = bn(ks[1], hidden)
    s3, t3 = bn(ks[2], oup)
    return {
        "w_exp": 0.1 * jax.random.normal(ks[3], (hidden, inp), jnp.float32),   # Conv2d(inp,hidden,1)
        "s1": s1, "t1": t1,
        "w_dw": 0.1 * jax.random.normal(ks[4], (hidden, 3, 3), jnp.float32),   # depthwise 3x3
        "s2": s2, "t2": t2,
        "w_proj": 0.1 * jax.random.normal(ks[5], (oup, hidden), jnp.float32),  # Conv2d(hidden,oup,1)
        "s3": s3, "t3": t3,
        "fc1_w": 0.1 * jax.random.normal(ks[6], (red, oup), jnp.float32),      # Linear(oup, red)
        "fc1_b": 0.1 * jax.random.normal(ks[7], (red,), jnp.float32),
        "fc2_w": 0.1 * jax.random.normal(ks[8], (oup, red), jnp.float32),      # Linear(red, oup)
        "fc2_b": 0.1 * jax.random.normal(ks[9], (oup,), jnp.float32),
    }


if __name__ == "__main__":
    key = jax.random.PRNGKey(0)
    k_x, k_p = jax.random.split(key)

    N, H, W = 2, 16, 16
    inp = oup = 16
    stride = 1
    expand_ratio = 4

    x = jax.random.normal(k_x, (N, inp, H, W), jnp.float32)   # NCHW, like the PyTorch module
    params = make_params(k_p, inp, oup, expand_ratio)

    out = inverted_residual_forward(x, params, stride=stride)
    out = jax.block_until_ready(out)

    ref = ref_forward(x, params, stride=stride)
    assert out.shape == (N, oup, H, W)
    assert jnp.allclose(out, ref, rtol=1e-3, atol=1e-3), "mismatch vs pure-JAX reference"

    print("KERNEL_OK")
</pallas_src>

<mosaic_0001>
module attributes {stable_mosaic.version = 11 : i64} {
  func.func @_fused_kernel(%arg0: i32, %arg1: memref<1x16x256xf32, #tpu.memory_space<vmem>>, %arg2: memref<64x16xf32, #tpu.memory_space<vmem>>, %arg3: memref<64x1xf32, #tpu.memory_space<vmem>>, %arg4: memref<9x64x1xf32, #tpu.memory_space<vmem>>, %arg5: memref<9x1x256xf32, #tpu.memory_space<vmem>>, %arg6: memref<64x1xf32, #tpu.memory_space<vmem>>, %arg7: memref<16x64xf32, #tpu.memory_space<vmem>>, %arg8: memref<16x1xf32, #tpu.memory_space<vmem>>, %arg9: memref<16x4xf32, #tpu.memory_space<vmem>>, %arg10: memref<1x4xf32, #tpu.memory_space<vmem>>, %arg11: memref<16x4xf32, #tpu.memory_space<vmem>>, %arg12: memref<16x1xf32, #tpu.memory_space<vmem>>, %arg13: memref<1x16x256xf32, #tpu.memory_space<vmem>>) attributes {dimension_semantics = [#tpu.dimension_semantics<parallel>], iteration_bounds = array<i64: 2>, scalar_prefetch = 0 : i64, scratch_operands = 0 : i64, tpu.core_type = #tpu.core_type<tc>, window_params = [{transform_indices = @transform_0, window_bounds = array<i64: 1, 16, 256>}, {pipeline_mode = #tpu.pipeline_mode<synchronous>, transform_indices = @transform_1, window_bounds = array<i64: 64, 16>}, {pipeline_mode = #tpu.pipeline_mode<synchronous>, transform_indices = @transform_2, window_bounds = array<i64: 64, 1>}, {pipeline_mode = #tpu.pipeline_mode<synchronous>, transform_indices = @transform_3, window_bounds = array<i64: 9, 64, 1>}, {pipeline_mode = #tpu.pipeline_mode<synchronous>, transform_indices = @transform_4, window_bounds = array<i64: 9, 1, 256>}, {pipeline_mode = #tpu.pipeline_mode<synchronous>, transform_indices = @transform_5, window_bounds = array<i64: 64, 1>}, {pipeline_mode = #tpu.pipeline_mode<synchronous>, transform_indices = @transform_6, window_bounds = array<i64: 16, 64>}, {pipeline_mode = #tpu.pipeline_mode<synchronous>, transform_indices = @transform_7, window_bounds = array<i64: 16, 1>}, {pipeline_mode = #tpu.pipeline_mode<synchronous>, transform_indices = @transform_8, window_bounds = array<i64: 16, 4>}, {pipeline_mode = #tpu.pipeline_mode<synchronous>, transform_indices = @transform_9, window_bounds = array<i64: 1, 4>}, {pipeline_mode = #tpu.pipeline_mode<synchronous>, transform_indices = @transform_10, window_bounds = array<i64: 16, 4>}, {pipeline_mode = #tpu.pipeline_mode<synchronous>, transform_indices = @transform_11, window_bounds = array<i64: 16, 1>}, {transform_indices = @transform_12, window_bounds = array<i64: 1, 16, 256>}]} {
    %c0 = arith.constant 0 : index
    %c0_0 = arith.constant 0 : index
    %c0_1 = arith.constant 0 : index
    %0 = vector.load %arg1[%c0, %c0_0, %c0_1] : memref<1x16x256xf32, #tpu.memory_space<vmem>>, vector<1x16x256xf32>
    %1 = vector.shape_cast %0 : vector<1x16x256xf32> to vector<16x256xf32>
    %c0_2 = arith.constant 0 : index
    %c0_3 = arith.constant 0 : index
    %2 = vector.load %arg2[%c0_2, %c0_3] : memref<64x16xf32, #tpu.memory_space<vmem>>, vector<64x16xf32>
    %cst = arith.constant dense<0.000000e+00> : vector<64x256xf32>
    %3 = tpu.matmul %2, %1, %cst {dimension_numbers = #tpu.dot_dimension_numbers<[1], [0], [0], [1], [0, 0, 1, 1], [], []>} : vector<64x16xf32>, vector<16x256xf32>, vector<64x256xf32> -> vector<64x256xf32>
    %c0_4 = arith.constant 0 : index
    %c0_5 = arith.constant 0 : index
    %4 = vector.load %arg3[%c0_4, %c0_5] : memref<64x1xf32, #tpu.memory_space<vmem>>, vector<64x1xf32>
    %5 = vector.broadcast %4 : vector<64x1xf32> to vector<64x256xf32>
    %6 = arith.addf %3, %5 : vector<64x256xf32>
    %cst_6 = arith.constant 0.000000e+00 : f32
    %cst_7 = arith.constant 6.000000e+00 : f32
    %7 = vector.broadcast %cst_6 : f32 to vector<64x256xf32>
    %8 = arith.maximumf %7, %6 : vector<64x256xf32>
    %9 = vector.broadcast %cst_7 : f32 to vector<64x256xf32>
    %10 = arith.minimumf %9, %8 : vector<64x256xf32>
    %c4 = arith.constant 4 : index
    %c0_8 = arith.constant 0 : index
    %c0_9 = arith.constant 0 : index
    %11 = vector.load %arg4[%c4, %c0_8, %c0_9] : memref<9x64x1xf32, #tpu.memory_space<vmem>>, vector<1x64x1xf32>
    %12 = vector.shape_cast %11 : vector<1x64x1xf32> to vector<64x1xf32>
    %13 = vector.broadcast %12 : vector<64x1xf32> to vector<64x256xf32>
    %14 = arith.mulf %10, %13 : vector<64x256xf32>
    %c17_i32 = arith.constant 17 : i32
    %15 = tpu.dynamic_rotate %10 by %c17_i32 dim 1 : vector<64x256xf32>, i32 -> vector<64x256xf32>
    %c0_10 = arith.constant 0 : index
    %c0_11 = arith.constant 0 : index
    %c0_12 = arith.constant 0 : index
    %16 = vector.load %arg5[%c0_10, %c0_11, %c0_12] : memref<9x1x256xf32, #tpu.memory_space<vmem>>, vector<1x1x256xf32>
    %17 = vector.shape_cast %16 : vector<1x1x256xf32> to vector<1x256xf32>
    %18 = vector.broadcast %17 : vector<1x256xf32> to vector<64x256xf32>
    %19 = arith.mulf %15, %18 : vector<64x256xf32>
    %c0_13 = arith.constant 0 : index
    %c0_14 = arith.constant 0 : index
    %c0_15 = arith.constant 0 : index
    %20 = vector.load %arg4[%c0_13, %c0_14, %c0_15] : memref<9x64x1xf32, #tpu.memory_space<vmem>>, vector<1x64x1xf32>
    %21 = vector.shape_cast %20 : vector<1x64x1xf32> to vector<64x1xf32>
    %22 = vector.broadcast %21 : vector<64x1xf32> to vector<64x256xf32>
    %23 = arith.mulf %19, %22 : vector<64x256xf32>
    %24 = arith.addf %14, %23 : vector<64x256xf32>
    %c16_i32 = arith.constant 16 : i32
    %25 = tpu.dynamic_rotate %10 by %c16_i32 dim 1 : vector<64x256xf32>, i32 -> vector<64x256xf32>
    %c1 = arith.constant 1 : index
    %c0_16 = arith.constant 0 : index
    %c0_17 = arith.constant 0 : index
    %26 = vector.load %arg5[%c1, %c0_16, %c0_17] : memref<9x1x256xf32, #tpu.memory_space<vmem>>, vector<1x1x256xf32>
    %27 = vector.shape_cast %26 : vector<1x1x256xf32> to vector<1x256xf32>
    %28 = vector.broadcast %27 : vector<1x256xf32> to vector<64x256xf32>
    %29 = arith.mulf %25, %28 : vector<64x256xf32>
    %c1_18 = arith.constant 1 : index
    %c0_19 = arith.constant 0 : index
    %c0_20 = arith.constant 0 : index
    %30 = vector.load %arg4[%c1_18, %c0_19, %c0_20] : memref<9x64x1xf32, #tpu.memory_space<vmem>>, vector<1x64x1xf32>
    %31 = vector.shape_cast %30 : vector<1x64x1xf32> to vector<64x1xf32>
    %32 = vector.broadcast %31 : vector<64x1xf32> to vector<64x256xf32>
    %33 = arith.mulf %29, %32 : vector<64x256xf32>
    %34 = arith.addf %24, %33 : vector<64x256xf32>
    %c15_i32 = arith.constant 15 : i32
    %35 = tpu.dynamic_rotate %10 by %c15_i32 dim 1 : vector<64x256xf32>, i32 -> vector<64x256xf32>
    %c2 = arith.constant 2 : index
    %c0_21 = arith.constant 0 : index
    %c0_22 = arith.constant 0 : index
    %36 = vector.load %arg5[%c2, %c0_21, %c0_22] : memref<9x1x256xf32, #tpu.memory_space<vmem>>, vector<1x1x256xf32>
    %37 = vector.shape_cast %36 : vector<1x1x256xf32> to vector<1x256xf32>
    %38 = vector.broadcast %37 : vector<1x256xf32> to vector<64x256xf32>
    %39 = arith.mulf %35, %38 : vector<64x256xf32>
    %c2_23 = arith.constant 2 : index
    %c0_24 = arith.constant 0 : index
    %c0_25 = arith.constant 0 : index
    %40 = vector.load %arg4[%c2_23, %c0_24, %c0_25] : memref<9x64x1xf32, #tpu.memory_space<vmem>>, vector<1x64x1xf32>
    %41 = vector.shape_cast %40 : vector<1x64x1xf32> to vector<64x1xf32>
    %42 = vector.broadcast %41 : vector<64x1xf32> to vector<64x256xf32>
    %43 = arith.mulf %39, %42 : vector<64x256xf32>
    %44 = arith.addf %34, %43 : vector<64x256xf32>
    %c1_i32 = arith.constant 1 : i32
    %45 = tpu.dynamic_rotate %10 by %c1_i32 dim 1 : vector<64x256xf32>, i32 -> vector<64x256xf32>
    %c3 = arith.constant 3 : index
    %c0_26 = arith.constant 0 : index
    %c0_27 = arith.constant 0 : index
    %46 = vector.load %arg5[%c3, %c0_26, %c0_27] : memref<9x1x256xf32, #tpu.memory_space<vmem>>, vector<1x1x256xf32>
    %47 = vector.shape_cast %46 : vector<1x1x256xf32> to vector<1x256xf32>
    %48 = vector.broadcast %47 : vector<1x256xf32> to vector<64x256xf32>
    %49 = arith.mulf %45, %48 : vector<64x256xf32>
    %c3_28 = arith.constant 3 : index
    %c0_29 = arith.constant 0 : index
    %c0_30 = arith.constant 0 : index
    %50 = vector.load %arg4[%c3_28, %c0_29, %c0_30] : memref<9x64x1xf32, #tpu.memory_space<vmem>>, vector<1x64x1xf32>
    %51 = vector.shape_cast %50 : vector<1x64x1xf32> to vector<64x1xf32>
    %52 = vector.broadcast %51 : vector<64x1xf32> to vector<64x256xf32>
    %53 = arith.mulf %49, %52 : vector<64x256xf32>
    %54 = arith.addf %44, %53 : vector<64x256xf32>
    %c255_i32 = arith.constant 255 : i32
    %55 = tpu.dynamic_rotate %10 by %c255_i32 dim 1 : vector<64x256xf32>, i32 -> vector<64x256xf32>
    %c5 = arith.constant 5 : index
    %c0_31 = arith.constant 0 : index
    %c0_32 = arith.constant 0 : index
    %56 = vector.load %arg5[%c5, %c0_31, %c0_32] : memref<9x1x256xf32, #tpu.memory_space<vmem>>, vector<1x1x256xf32>
    %57 = vector.shape_cast %56 : vector<1x1x256xf32> to vector<1x256xf32>
    %58 = vector.broadcast %57 : vector<1x256xf32> to vector<64x256xf32>
    %59 = arith.mulf %55, %58 : vector<64x256xf32>
    %c5_33 = arith.constant 5 : index
    %c0_34 = arith.constant 0 : index
    %c0_35 = arith.constant 0 : index
    %60 = vector.load %arg4[%c5_33, %c0_34, %c0_35] : memref<9x64x1xf32, #tpu.memory_space<vmem>>, vector<1x64x1xf32>
    %61 = vector.shape_cast %60 : vector<1x64x1xf32> to vector<64x1xf32>
    %62 = vector.broadcast %61 : vector<64x1xf32> to vector<64x256xf32>
    %63 = arith.mulf %59, %62 : vector<64x256xf32>
    %64 = arith.addf %54, %63 : vector<64x256xf32>
    %c241_i32 = arith.constant 241 : i32
    %65 = tpu.dynamic_rotate %10 by %c241_i32 dim 1 : vector<64x256xf32>, i32 -> vector<64x256xf32>
    %c6 = arith.constant 6 : index
    %c0_36 = arith.constant 0 : index
    %c0_37 = arith.constant 0 : index
    %66 = vector.load %arg5[%c6, %c0_36, %c0_37] : memref<9x1x256xf32, #tpu.memory_space<vmem>>, vector<1x1x256xf32>
    %67 = vector.shape_cast %66 : vector<1x1x256xf32> to vector<1x256xf32>
    %68 = vector.broadcast %67 : vector<1x256xf32> to vector<64x256xf32>
    %69 = arith.mulf %65, %68 : vector<64x256xf32>
    %c6_38 = arith.constant 6 : index
    %c0_39 = arith.constant 0 : index
    %c0_40 = arith.constant 0 : index
    %70 = vector.load %arg4[%c6_38, %c0_39, %c0_40] : memref<9x64x1xf32, #tpu.memory_space<vmem>>, vector<1x64x1xf32>
    %71 = vector.shape_cast %70 : vector<1x64x1xf32> to vector<64x1xf32>
    %72 = vector.broadcast %71 : vector<64x1xf32> to vector<64x256xf32>
    %73 = arith.mulf %69, %72 : vector<64x256xf32>
    %74 = arith.addf %64, %73 : vector<64x256xf32>
    %c240_i32 = arith.constant 240 : i32
    %75 = tpu.dynamic_rotate %10 by %c240_i32 dim 1 : vector<64x256xf32>, i32 -> vector<64x256xf32>
    %c7 = arith.constant 7 : index
    %c0_41 = arith.constant 0 : index
    %c0_42 = arith.constant 0 : index
    %76 = vector.load %arg5[%c7, %c0_41, %c0_42] : memref<9x1x256xf32, #tpu.memory_space<vmem>>, vector<1x1x256xf32>
    %77 = vector.shape_cast %76 : vector<1x1x256xf32> to vector<1x256xf32>
    %78 = vector.broadcast %77 : vector<1x256xf32> to vector<64x256xf32>
    %79 = arith.mulf %75, %78 : vector<64x256xf32>
    %c7_43 = arith.constant 7 : index
    %c0_44 = arith.constant 0 : index
    %c0_45 = arith.constant 0 : index
    %80 = vector.load %arg4[%c7_43, %c0_44, %c0_45] : memref<9x64x1xf32, #tpu.memory_space<vmem>>, vector<1x64x1xf32>
    %81 = vector.shape_cast %80 : vector<1x64x1xf32> to vector<64x1xf32>
    %82 = vector.broadcast %81 : vector<64x1xf32> to vector<64x256xf32>
    %83 = arith.mulf %79, %82 : vector<64x256xf32>
    %84 = arith.addf %74, %83 : vector<64x256xf32>
    %c239_i32 = arith.constant 239 : i32
    %85 = tpu.dynamic_rotate %10 by %c239_i32 dim 1 : vector<64x256xf32>, i32 -> vector<64x256xf32>
    %c8 = arith.constant 8 : index
    %c0_46 = arith.constant 0 : index
    %c0_47 = arith.constant 0 : index
    %86 = vector.load %arg5[%c8, %c0_46, %c0_47] : memref<9x1x256xf32, #tpu.memory_space<vmem>>, vector<1x1x256xf32>
    %87 = vector.shape_cast %86 : vector<1x1x256xf32> to vector<1x256xf32>
    %88 = vector.broadcast %87 : vector<1x256xf32> to vector<64x256xf32>
    %89 = arith.mulf %85, %88 : vector<64x256xf32>
    %c8_48 = arith.constant 8 : index
    %c0_49 = arith.constant 0 : index
    %c0_50 = arith.constant 0 : index
    %90 = vector.load %arg4[%c8_48, %c0_49, %c0_50] : memref<9x64x1xf32, #tpu.memory_space<vmem>>, vector<1x64x1xf32>
    %91 = vector.shape_cast %90 : vector<1x64x1xf32> to vector<64x1xf32>
    %92 = vector.broadcast %91 : vector<64x1xf32> to vector<64x256xf32>
    %93 = arith.mulf %89, %92 : vector<64x256xf32>
    %94 = arith.addf %84, %93 : vector<64x256xf32>
    %c0_51 = arith.constant 0 : index
    %c0_52 = arith.constant 0 : index
    %95 = vector.load %arg6[%c0_51, %c0_52] : memref<64x1xf32, #tpu.memory_space<vmem>>, vector<64x1xf32>
    %96 = vector.broadcast %95 : vector<64x1xf32> to vector<64x256xf32>
    %97 = arith.addf %94, %96 : vector<64x256xf32>
    %cst_53 = arith.constant 0.000000e+00 : f32
    %cst_54 = arith.constant 6.000000e+00 : f32
    %98 = vector.broadcast %cst_53 : f32 to vector<64x256xf32>
    %99 = arith.maximumf %98, %97 : vector<64x256xf32>
    %100 = vector.broadcast %cst_54 : f32 to vector<64x256xf32>
    %101 = arith.minimumf %100, %99 : vector<64x256xf32>
    %c0_55 = arith.constant 0 : index
    %c0_56 = arith.constant 0 : index
    %102 = vector.load %arg7[%c0_55, %c0_56] : memref<16x64xf32, #tpu.memory_space<vmem>>, vector<16x64xf32>
    %cst_57 = arith.constant dense<0.000000e+00> : vector<16x256xf32>
    %103 = tpu.matmul %102, %101, %cst_57 {dimension_numbers = #tpu.dot_dimension_numbers<[1], [0], [0], [1], [0, 0, 1, 1], [], []>} : vector<16x64xf32>, vector<64x256xf32>, vector<16x256xf32> -> vector<16x256xf32>
    %c0_58 = arith.constant 0 : index
    %c0_59 = arith.constant 0 : index
    %104 = vector.load %arg8[%c0_58, %c0_59] : memref<16x1xf32, #tpu.memory_space<vmem>>, vector<16x1xf32>
    %105 = vector.broadcast %104 : vector<16x1xf32> to vector<16x256xf32>
    %106 = arith.addf %103, %105 : vector<16x256xf32>
    %cst_60 = arith.constant dense<0.000000e+00> : vector<16xf32>
    %107 = vector.multi_reduction <add>, %106, %cst_60 [1] : vector<16x256xf32> to vector<16xf32>
    %108 = vector.shape_cast %107 : vector<16xf32> to vector<16x1xf32>
    %cst_61 = arith.constant 3.906250e-03 : f32
    %109 = vector.broadcast %cst_61 : f32 to vector<16x1xf32>
    %110 = arith.mulf %108, %109 : vector<16x1xf32>
    %c0_62 = arith.constant 0 : index
    %c0_63 = arith.constant 0 : index
    %111 = vector.load %arg9[%c0_62, %c0_63] : memref<16x4xf32, #tpu.memory_space<vmem>>, vector<16x4xf32>
    %112 = vector.broadcast %110 : vector<16x1xf32> to vector<16x4xf32>
    %113 = arith.mulf %111, %112 : vector<16x4xf32>
    %cst_64 = arith.constant dense<0.000000e+00> : vector<4xf32>
    %114 = vector.multi_reduction <add>, %113, %cst_64 [0] : vector<16x4xf32> to vector<4xf32>
    %115 = vector.shape_cast %114 : vector<4xf32> to vector<1x4xf32>
    %c0_65 = arith.constant 0 : index
    %c0_66 = arith.constant 0 : index
    %116 = vector.load %arg10[%c0_65, %c0_66] : memref<1x4xf32, #tpu.memory_space<vmem>>, vector<1x4xf32>
    %117 = arith.addf %115, %116 : vector<1x4xf32>
    %cst_67 = arith.constant 0.000000e+00 : f32
    %cst_68 = arith.constant 6.000000e+00 : f32
    %118 = vector.broadcast %cst_67 : f32 to vector<1x4xf32>
    %119 = arith.maximumf %118, %117 : vector<1x4xf32>
    %120 = vector.broadcast %cst_68 : f32 to vector<1x4xf32>
    %121 = arith.minimumf %120, %119 : vector<1x4xf32>
    %c0_69 = arith.constant 0 : index
    %c0_70 = arith.constant 0 : index
    %122 = vector.load %arg11[%c0_69, %c0_70] : memref<16x4xf32, #tpu.memory_space<vmem>>, vector<16x4xf32>
    %123 = vector.broadcast %121 : vector<1x4xf32> to vector<16x4xf32>
    %124 = arith.mulf %122, %123 : vector<16x4xf32>
    %cst_71 = arith.constant dense<0.000000e+00> : vector<16xf32>
    %125 = vector.multi_reduction <add>, %124, %cst_71 [1] : vector<16x4xf32> to vector<16xf32>
    %126 = vector.shape_cast %125 : vector<16xf32> to vector<16x1xf32>
    %c0_72 = arith.constant 0 : index
    %c0_73 = arith.constant 0 : index
    %127 = vector.load %arg12[%c0_72, %c0_73] : memref<16x1xf32, #tpu.memory_space<vmem>>, vector<16x1xf32>
    %128 = arith.addf %126, %127 : vector<16x1xf32>
    %129 = arith.negf %128 : vector<16x1xf32>
    %130 = math.exp %129 : vector<16x1xf32>
    %cst_74 = arith.constant 1.000000e+00 : f32
    %131 = vector.broadcast %cst_74 : f32 to vector<16x1xf32>
    %132 = arith.addf %131, %130 : vector<16x1xf32>
    %133 = arith.divf %131, %132 : vector<16x1xf32>
    %134 = vector.broadcast %133 : vector<16x1xf32> to vector<16x256xf32>
    %135 = arith.mulf %106, %134 : vector<16x256xf32>
    %136 = arith.addf %135, %1 : vector<16x256xf32>
    %c0_75 = arith.constant 0 : index
    %c0_76 = arith.constant 0 : index
    %c0_77 = arith.constant 0 : index
    %137 = vector.load %arg13[%c0_75, %c0_76, %c0_77] : memref<1x16x256xf32, #tpu.memory_space<vmem>>, vector<1x16x256xf32>
    %138 = vector.shape_cast %137 : vector<1x16x256xf32> to vector<16x256xf32>
    %139 = vector.shape_cast %136 : vector<16x256xf32> to vector<1x16x256xf32>
    tpu.vector_store %arg13[%c0_75, %c0_76, %c0_77], %139 {strides = array<i32>} : memref<1x16x256xf32, #tpu.memory_space<vmem>>, vector<1x16x256xf32>,
    return
  }
  func.func @transform_0(%arg0: i32) -> (i32, i32, i32) {
    %c0_i32 = arith.constant 0 : i32
    %c0_i32_0 = arith.constant 0 : i32
    %c0_i32_1 = arith.constant 0 : i32
    return %arg0, %c0_i32, %c0_i32_0 : i32, i32, i32
  }
  func.func @transform_1(%arg0: i32) -> (i32, i32) {
    %c0_i32 = arith.constant 0 : i32
    %c0_i32_0 = arith.constant 0 : i32
    %c0_i32_1 = arith.constant 0 : i32
    return %c0_i32, %c0_i32_0 : i32, i32
  }
  func.func @transform_2(%arg0: i32) -> (i32, i32) {
    %c0_i32 = arith.constant 0 : i32
    %c0_i32_0 = arith.constant 0 : i32
    %c0_i32_1 = arith.constant 0 : i32
    return %c0_i32, %c0_i32_0 : i32, i32
  }
  func.func @transform_3(%arg0: i32) -> (i32, i32, i32) {
    %c0_i32 = arith.constant 0 : i32
    %c0_i32_0 = arith.constant 0 : i32
    %c0_i32_1 = arith.constant 0 : i32
    %c0_i32_2 = arith.constant 0 : i32
    return %c0_i32, %c0_i32_0, %c0_i32_1 : i32, i32, i32
  }
  func.func @transform_4(%arg0: i32) -> (i32, i32, i32) {
    %c0_i32 = arith.constant 0 : i32
    %c0_i32_0 = arith.constant 0 : i32
    %c0_i32_1 = arith.constant 0 : i32
    %c0_i32_2 = arith.constant 0 : i32
    return %c0_i32, %c0_i32_0, %c0_i32_1 : i32, i32, i32
  }
  func.func @transform_5(%arg0: i32) -> (i32, i32) {
    %c0_i32 = arith.constant 0 : i32
    %c0_i32_0 = arith.constant 0 : i32
    %c0_i32_1 = arith.constant 0 : i32
    return %c0_i32, %c0_i32_0 : i32, i32
  }
  func.func @transform_6(%arg0: i32) -> (i32, i32) {
    %c0_i32 = arith.constant 0 : i32
    %c0_i32_0 = arith.constant 0 : i32
    %c0_i32_1 = arith.constant 0 : i32
    return %c0_i32, %c0_i32_0 : i32, i32
  }
  func.func @transform_7(%arg0: i32) -> (i32, i32) {
    %c0_i32 = arith.constant 0 : i32
    %c0_i32_0 = arith.constant 0 : i32
    %c0_i32_1 = arith.constant 0 : i32
    return %c0_i32, %c0_i32_0 : i32, i32
  }
  func.func @transform_8(%arg0: i32) -> (i32, i32) {
    %c0_i32 = arith.constant 0 : i32
    %c0_i32_0 = arith.constant 0 : i32
    %c0_i32_1 = arith.constant 0 : i32
    return %c0_i32, %c0_i32_0 : i32, i32
  }
  func.func @transform_9(%arg0: i32) -> (i32, i32) {
    %c0_i32 = arith.constant 0 : i32
    %c0_i32_0 = arith.constant 0 : i32
    %c0_i32_1 = arith.constant 0 : i32
    return %c0_i32, %c0_i32_0 : i32, i32
  }
  func.func @transform_10(%arg0: i32) -> (i32, i32) {
    %c0_i32 = arith.constant 0 : i32
    %c0_i32_0 = arith.constant 0 : i32
    %c0_i32_1 = arith.constant 0 : i32
    return %c0_i32, %c0_i32_0 : i32, i32
  }
  func.func @transform_11(%arg0: i32) -> (i32, i32) {
    %c0_i32 = arith.constant 0 : i32
    %c0_i32_0 = arith.constant 0 : i32
    %c0_i32_1 = arith.constant 0 : i32
    return %c0_i32, %c0_i32_0 : i32, i32
  }
  func.func @transform_12(%arg0: i32) -> (i32, i32, i32) {
    %c0_i32 = arith.constant 0 : i32
    %c0_i32_0 = arith.constant 0 : i32
    %c0_i32_1 = arith.constant 0 : i32
    return %arg0, %c0_i32, %c0_i32_0 : i32, i32, i32
  }
}

</mosaic_0001>

<llo_original>
// kernel: tpu_custom_call.1
$region0: #{tpu_custom_call.1}
  #allocation0 [shape = 'u32[]', space=smem, size = 0x4, offset = 0x4, fixed_abs, tag = 'smem constant byte address 0x4 - core index']
  #allocation1 [shape = 'u32[144,128]{1,0:T(1,128)}', space=vmem, size = 0x12000, scoped, tag = 'internal scratch']
  %s0 = inlined_call_operand.vmem [shape: f32[2,16,256], index: 0, kind: input, shape index: {}]
  %s1 = inlined_call_operand.vmem [shape: f32[64,16], index: 1, kind: input, shape index: {}]
  %s2 = inlined_call_operand.vmem [shape: f32[64,1], index: 2, kind: input, shape index: {}]
  %s3 = inlined_call_operand.vmem [shape: f32[9,64,1], index: 3, kind: input, shape index: {}]
  %s4 = inlined_call_operand.vmem [shape: f32[9,1,256], index: 4, kind: input, shape index: {}]
  %s5 = inlined_call_operand.vmem [shape: f32[64,1], index: 5, kind: input, shape index: {}]
  %s6 = inlined_call_operand.vmem [shape: f32[16,64], index: 6, kind: input, shape index: {}]
  %s7 = inlined_call_operand.vmem [shape: f32[16,1], index: 7, kind: input, shape index: {}]
  %s8 = inlined_call_operand.vmem [shape: f32[16,4], index: 8, kind: input, shape index: {}]
  %s9 = inlined_call_operand.vmem [shape: f32[1,4], index: 9, kind: input, shape index: {}]
  %s10 = inlined_call_operand.vmem [shape: f32[16,4], index: 10, kind: input, shape index: {}]
  %s11 = inlined_call_operand.vmem [shape: f32[16,1], index: 11, kind: input, shape index: {}]
  %s12 = inlined_call_operand.hbm [shape: f32[2,16,256], index: 12, kind: output, shape index: {}]
  %s13 = sld [smem:[#allocation0]]
  $region81: #{tpu_custom_call.1} parent=0
    _
  %s15 = ssub.s32 1, %s13
  %s16 = scalar_select 0, %s15, %s13
  $region1: #{tpu_custom_call.1} parent=0
    #allocation2 [shape = 'u8[32768]{0}', space=vmem, size = 0x8000, scoped, tag = 'output window, operand 0']
    #allocation3 [shape = 's32[2]{0}', space=sflag, size = 0x8, scoped, tag = 'scoped memory for tpu_custom_call.1']
    %17 = vsyncpa [#allocation3], 0
    %s18 = scalar_lea.sflag [#allocation3], 1
    %19 = vsyncpa %s18, 0
    loop: start=0, step=1, limit=4
    $region2: #{tpu_custom_call.1} parent=1 // loop_pre_header
      _
    $region3: #{tpu_custom_call.1} parent=1 // loop_header
      %s21 = sphi 0, %s25
      %p22 = scmp.ge.s32.totalorder %s21, 4
      %s31 = sphi 0, %s33
      %s34 = sphi 0, %s31
      %s35 = sphi 0, %s34
      %s51 = sphi 0, %s35
      %s55 = sphi 0, %s55
      %s57 = sphi 0, %s55
      %s58 = sphi 0, %s57
      %s72 = sphi 0, %s58
      %s76 = sphi 0, %s76
      %s78 = sphi 0, %s76
      %s79 = sphi 0, %s78
      %s93 = sphi 0, %s79
      %s97 = sphi 0, %s97
      %s99 = sphi 0, %s97
      %s100 = sphi 0, %s99
      %s114 = sphi 0, %s100
      %s118 = sphi 0, %s118
      %s120 = sphi 0, %s118
      %s121 = sphi 0, %s120
      %s135 = sphi 0, %s121
      %s139 = sphi 0, %s139
      %s141 = sphi 0, %s139
      %s142 = sphi 0, %s141
      %s156 = sphi 0, %s142
      %s160 = sphi 0, %s160
      %s162 = sphi 0, %s160
      %s163 = sphi 0, %s162
      %s177 = sphi 0, %s163
      %s181 = sphi 0, %s181
      %s183 = sphi 0, %s181
      %s184 = sphi 0, %s183
      %s198 = sphi 0, %s184
      %s202 = sphi 0, %s202
      %s204 = sphi 0, %s202
      %s205 = sphi 0, %s204
      %s219 = sphi 0, %s205
      %s223 = sphi 0, %s223
      %s225 = sphi 0, %s223
      %s226 = sphi 0, %s225
      %s240 = sphi 0, %s226
      %s244 = sphi 0, %s244
      %s246 = sphi 0, %s244
      %s247 = sphi 0, %s246
      %s261 = sphi 0, %s247
      %s265 = sphi 0, %s265
      %s267 = sphi 0, %s265
      %s268 = sphi 0, %s267
      %s282 = sphi 0, %s268
      %s288 = sphi 0, %s290
      %s291 = sphi 0, %s288
      %s292 = sphi 0, %s291
      %s308 = sphi 0, %s292
    $region4: #{tpu_custom_call.1} parent=1 // loop_header_branch
      %24 = sbr.rel (%p22) target = $region8
    $region5: #{tpu_custom_call.1} parent=1 // loop_body
      %s26 = ssub.s32 %s21, 1
      %s27 = ssub.s32 %s21, 2
      %s28 = sadd.s32 %s21, 1
      %s29 = ssub.s32 %s21, %s28
      %p30 = scmp.eq.s32.totalorder %s29, 0
      %s32 = sadd.s32 %s31, 1
      %s33 = scalar_select %p30, %s31, %s32
      %p36 = pneg %p30
      %p37 = scmp.eq.s32.totalorder %s21, 1
      %p38 = por %p36, %p37
      %p39 = scmp.ne.s32.totalorder %s31, %s34
      %p40 = scmp.eq.s32.totalorder %s21, 0
      %p41 = por %p39, %p40
      %p42 = scmp.ne.s32.totalorder %s31, %s34
      %p43 = scmp.eq.s32.totalorder %s26, 1
      %p44 = por %p42, %p43
      %p45 = scmp.ne.s32.totalorder %s34, %s35
      %p46 = scmp.eq.s32.totalorder %s26, 0
      %p47 = por %p45, %p46
      %p48 = scmp.ne.s32.totalorder %s34, %s35
      %p49 = scmp.eq.s32.totalorder %s27, 1
      %p50 = por %p48, %p49
      %p52 = scmp.ne.s32.totalorder %s35, %s51
      %p53 = scmp.eq.s32.totalorder %s27, 0
      %p54 = por %p52, %p53
      %s56 = sadd.s32 %s55, 1
      %p59 = scmp.eq.s32.totalorder %s21, 1
      %p60 = scmp.ne.s32.totalorder %s55, %s57
      %p61 = scmp.eq.s32.totalorder %s21, 0
      %p62 = por %p60, %p61
      %p63 = scmp.ne.s32.totalorder %s55, %s57
      %p64 = scmp.eq.s32.totalorder %s26, 1
      %p65 = por %p63, %p64
      %p66 = scmp.ne.s32.totalorder %s57, %s58
      %p67 = scmp.eq.s32.totalorder %s26, 0
      %p68 = por %p66, %p67
      %p69 = scmp.ne.s32.totalorder %s57, %s58
      %p70 = scmp.eq.s32.totalorder %s27, 1
      %p71 = por %p69, %p70
      %p73 = scmp.ne.s32.totalorder %s58, %s72
      %p74 = scmp.eq.s32.totalorder %s27, 0
      %p75 = por %p73, %p74
      %s77 = sadd.s32 %s76, 1
      %p80 = scmp.eq.s32.totalorder %s21, 1
      %p81 = scmp.ne.s32.totalorder %s76, %s78
      %p82 = scmp.eq.s32.totalorder %s21, 0
      %p83 = por %p81, %p82
      %p84 = scmp.ne.s32.totalorder %s76, %s78
      %p85 = scmp.eq.s32.totalorder %s26, 1
      %p86 = por %p84, %p85
      %p87 = scmp.ne.s32.totalorder %s78, %s79
      %p88 = scmp.eq.s32.totalorder %s26, 0
      %p89 = por %p87, %p88
      %p90 = scmp.ne.s32.totalorder %s78, %s79
      %p91 = scmp.eq.s32.totalorder %s27, 1
      %p92 = por %p90, %p91
      %p94 = scmp.ne.s32.totalorder %s79, %s93
      %p95 = scmp.eq.s32.totalorder %s27, 0
      %p96 = por %p94, %p95
      %s98 = sadd.s32 %s97, 1
      %p101 = scmp.eq.s32.totalorder %s21, 1
      %p102 = scmp.ne.s32.totalorder %s97, %s99
      %p103 = scmp.eq.s32.totalorder %s21, 0
      %p104 = por %p102, %p103
      %p105 = scmp.ne.s32.totalorder %s97, %s99
      %p106 = scmp.eq.s32.totalorder %s26, 1
      %p107 = por %p105, %p106
      %p108 = scmp.ne.s32.totalorder %s99, %s100
      %p109 = scmp.eq.s32.totalorder %s26, 0
      %p110 = por %p108, %p109
      %p111 = scmp.ne.s32.totalorder %s99, %s100
      %p112 = scmp.eq.s32.totalorder %s27, 1
      %p113 = por %p111, %p112
      %p115 = scmp.ne.s32.totalorder %s100, %s114
      %p116 = scmp.eq.s32.totalorder %s27, 0
      %p117 = por %p115, %p116
      %s119 = sadd.s32 %s118, 1
      %p122 = scmp.eq.s32.totalorder %s21, 1
      %p123 = scmp.ne.s32.totalorder %s118, %s120
      %p124 = scmp.eq.s32.totalorder %s21, 0
      %p125 = por %p123, %p124
      %p126 = scmp.ne.s32.totalorder %s118, %s120
      %p127 = scmp.eq.s32.totalorder %s26, 1
      %p128 = por %p126, %p127
      %p129 = scmp.ne.s32.totalorder %s120, %s121
      %p130 = scmp.eq.s32.totalorder %s26, 0
      %p131 = por %p129, %p130
      %p132 = scmp.ne.s32.totalorder %s120, %s121
      %p133 = scmp.eq.s32.totalorder %s27, 1
      %p134 = por %p132, %p133
      %p136 = scmp.ne.s32.totalorder %s121, %s135
      %p137 = scmp.eq.s32.totalorder %s27, 0
      %p138 = por %p136, %p137
      %s140 = sadd.s32 %s139, 1
      %p143 = scmp.eq.s32.totalorder %s21, 1
      %p144 = scmp.ne.s32.totalorder %s139, %s141
      %p145 = scmp.eq.s32.totalorder %s21, 0
      %p146 = por %p144, %p145
      %p147 = scmp.ne.s32.totalorder %s139, %s141
      %p148 = scmp.eq.s32.totalorder %s26, 1
      %p149 = por %p147, %p148
      %p150 = scmp.ne.s32.totalorder %s141, %s142
      %p151 = scmp.eq.s32.totalorder %s26, 0
      %p152 = por %p150, %p151
      %p153 = scmp.ne.s32.totalorder %s141, %s142
      %p154 = scmp.eq.s32.totalorder %s27, 1
      %p155 = por %p153, %p154
      %p157 = scmp.ne.s32.totalorder %s142, %s156
      %p158 = scmp.eq.s32.totalorder %s27, 0
      %p159 = por %p157, %p158
      %s161 = sadd.s32 %s160, 1
      %p164 = scmp.eq.s32.totalorder %s21, 1
      %p165 = scmp.ne.s32.totalorder %s160, %s162
      %p166 = scmp.eq.s32.totalorder %s21, 0
      %p167 = por %p165, %p166
      %p168 = scmp.ne.s32.totalorder %s160, %s162
      %p169 = scmp.eq.s32.totalorder %s26, 1
      %p170 = por %p168, %p169
      %p171 = scmp.ne.s32.totalorder %s162, %s163
      %p172 = scmp.eq.s32.totalorder %s26, 0
      %p173 = por %p171, %p172
      %p174 = scmp.ne.s32.totalorder %s162, %s163
      %p175 = scmp.eq.s32.totalorder %s27, 1
      %p176 = por %p174, %p175
      %p178 = scmp.ne.s32.totalorder %s163, %s177
      %p179 = scmp.eq.s32.totalorder %s27, 0
      %p180 = por %p178, %p179
      %s182 = sadd.s32 %s181, 1
      %p185 = scmp.eq.s32.totalorder %s21, 1
      %p186 = scmp.ne.s32.totalorder %s181, %s183
      %p187 = scmp.eq.s32.totalorder %s21, 0
      %p188 = por %p186, %p187
      %p189 = scmp.ne.s32.totalorder %s181, %s183
      %p190 = scmp.eq.s32.totalorder %s26, 1
      %p191 = por %p189, %p190
      %p192 = scmp.ne.s32.totalorder %s183, %s184
      %p193 = scmp.eq.s32.totalorder %s26, 0
      %p194 = por %p192, %p193
      %p195 = scmp.ne.s32.totalorder %s183, %s184
      %p196 = scmp.eq.s32.totalorder %s27, 1
      %p197 = por %p195, %p196
      %p199 = scmp.ne.s32.totalorder %s184, %s198
      %p200 = scmp.eq.s32.totalorder %s27, 0
      %p201 = por %p199, %p200
      %s203 = sadd.s32 %s202, 1
      %p206 = scmp.eq.s32.totalorder %s21, 1
      %p207 = scmp.ne.s32.totalorder %s202, %s204
      %p208 = scmp.eq.s32.totalorder %s21, 0
      %p209 = por %p207, %p208
      %p210 = scmp.ne.s32.totalorder %s202, %s204
      %p211 = scmp.eq.s32.totalorder %s26, 1
      %p212 = por %p210, %p211
      %p213 = scmp.ne.s32.totalorder %s204, %s205
      %p214 = scmp.eq.s32.totalorder %s26, 0
      %p215 = por %p213, %p214
      %p216 = scmp.ne.s32.totalorder %s204, %s205
      %p217 = scmp.eq.s32.totalorder %s27, 1
      %p218 = por %p216, %p217
      %p220 = scmp.ne.s32.totalorder %s205, %s219
      %p221 = scmp.eq.s32.totalorder %s27, 0
      %p222 = por %p220, %p221
      %s224 = sadd.s32 %s223, 1
      %p227 = scmp.eq.s32.totalorder %s21, 1
      %p228 = scmp.ne.s32.totalorder %s223, %s225
      %p229 = scmp.eq.s32.totalorder %s21, 0
      %p230 = por %p228, %p229
      %p231 = scmp.ne.s32.totalorder %s223, %s225
      %p232 = scmp.eq.s32.totalorder %s26, 1
      %p233 = por %p231, %p232
      %p234 = scmp.ne.s32.totalorder %s225, %s226
      %p235 = scmp.eq.s32.totalorder %s26, 0
      %p236 = por %p234, %p235
      %p237 = scmp.ne.s32.totalorder %s225, %s226
      %p238 = scmp.eq.s32.totalorder %s27, 1
      %p239 = por %p237, %p238
      %p241 = scmp.ne.s32.totalorder %s226, %s240
      %p242 = scmp.eq.s32.totalorder %s27, 0
      %p243 = por %p241, %p242
      %s245 = sadd.s32 %s244, 1
      %p248 = scmp.eq.s32.totalorder %s21, 1
      %p249 = scmp.ne.s32.totalorder %s244, %s246
      %p250 = scmp.eq.s32.totalorder %s21, 0
      %p251 = por %p249, %p250
      %p252 = scmp.ne.s32.totalorder %s244, %s246
      %p253 = scmp.eq.s32.totalorder %s26, 1
      %p254 = por %p252, %p253
      %p255 = scmp.ne.s32.totalorder %s246, %s247
      %p256 = scmp.eq.s32.totalorder %s26, 0
      %p257 = por %p255, %p256
      %p258 = scmp.ne.s32.totalorder %s246, %s247
      %p259 = scmp.eq.s32.totalorder %s27, 1
      %p260 = por %p258, %p259
      %p262 = scmp.ne.s32.totalorder %s247, %s261
      %p263 = scmp.eq.s32.totalorder %s27, 0
      %p264 = por %p262, %p263
      %s266 = sadd.s32 %s265, 1
      %p269 = scmp.eq.s32.totalorder %s21, 1
      %p270 = scmp.ne.s32.totalorder %s265, %s267
      %p271 = scmp.eq.s32.totalorder %s21, 0
      %p272 = por %p270, %p271
      %p273 = scmp.ne.s32.totalorder %s265, %s267
      %p274 = scmp.eq.s32.totalorder %s26, 1
      %p275 = por %p273, %p274
      %p276 = scmp.ne.s32.totalorder %s267, %s268
      %p277 = scmp.eq.s32.totalorder %s26, 0
      %p278 = por %p276, %p277
      %p279 = scmp.ne.s32.totalorder %s267, %s268
      %p280 = scmp.eq.s32.totalorder %s27, 1
      %p281 = por %p279, %p280
      %p283 = scmp.ne.s32.totalorder %s268, %s282
      %p284 = scmp.eq.s32.totalorder %s27, 0
      %p285 = por %p283, %p284
      %s286 = ssub.s32 %s21, %s28
      %p287 = scmp.eq.s32.totalorder %s286, 0
      %s289 = sadd.s32 %s288, 1
      %s290 = scalar_select %p287, %s288, %s289
      %p293 = pneg %p287
      %p294 = scmp.eq.s32.totalorder %s21, 1
      %p295 = por %p293, %p294
      %p296 = scmp.ne.s32.totalorder %s288, %s291
      %p297 = scmp.eq.s32.totalorder %s21, 0
      %p298 = por %p296, %p297
      %p299 = scmp.ne.s32.totalorder %s288, %s291
      %p300 = scmp.eq.s32.totalorder %s26, 1
      %p301 = por %p299, %p300
      %p302 = scmp.ne.s32.totalorder %s291, %s292
      %p303 = scmp.eq.s32.totalorder %s26, 0
      %p304 = por %p302, %p303
      %p305 = scmp.ne.s32.totalorder %s291, %s292
      %p306 = scmp.eq.s32.totalorder %s27, 1
      %p307 = por %p305, %p306
      %p309 = scmp.ne.s32.totalorder %s292, %s308
      %p310 = scmp.eq.s32.totalorder %s27, 0
      %p311 = por %p309, %p310
      %p312 = scmp.le.s32.totalorder 1, %s21
      %p313 = scmp.lt.s32.totalorder %s21, 3
      %p314 = pnand %p312, %p313
      %p315 = pneg %p314
      // Predicated region
      $region9: #{tpu_custom_call.1} parent=5 // pred_check
        _
      $region10: #{tpu_custom_call.1} parent=5 // pred_check_branch
        %317 = sbr.rel (%p314) target = $region12
      $region11: #{tpu_custom_call.1} parent=5 // pred_region
        %s318 = ssub.s32 %s21, 1
        // Predicated region
        $region13: #{tpu_custom_call.1} parent=11 // pred_check
          %p319 = pneg %p68
        $region14: #{tpu_custom_call.1} parent=11 // pred_check_branch
          %321 = sbr.rel (%p319) target = $region16
        $region15: #{tpu_custom_call.1} parent=11 // pred_region
          _
        $region16: #{tpu_custom_call.1} parent=11 // pred_fallthru
          _
        // Predicated region
        $region17: #{tpu_custom_call.1} parent=11 // pred_check
          %p322 = pneg %p89
        $region18: #{tpu_custom_call.1} parent=11 // pred_check_branch
          %324 = sbr.rel (%p322) target = $region20
        $region19: #{tpu_custom_call.1} parent=11 // pred_region
          _
        $region20: #{tpu_custom_call.1} parent=11 // pred_fallthru
          _
        // Predicated region
        $region21: #{tpu_custom_call.1} parent=11 // pred_check
          %p325 = pneg %p110
        $region22: #{tpu_custom_call.1} parent=11 // pred_check_branch
          %327 = sbr.rel (%p325) target = $region24
        $region23: #{tpu_custom_call.1} parent=11 // pred_region
          _
        $region24: #{tpu_custom_call.1} parent=11 // pred_fallthru
          _
        // Predicated region
        $region25: #{tpu_custom_call.1} parent=11 // pred_check
          %p328 = pneg %p131
        $region26: #{tpu_custom_call.1} parent=11 // pred_check_branch
          %330 = sbr.rel (%p328) target = $region28
        $region27: #{tpu_custom_call.1} parent=11 // pred_region
          _
        $region28: #{tpu_custom_call.1} parent=11 // pred_fallthru
          _
        // Predicated region
        $region29: #{tpu_custom_call.1} parent=11 // pred_check
          %p331 = pneg %p152
        $region30: #{tpu_custom_call.1} parent=11 // pred_check_branch
          %333 = sbr.rel (%p331) target = $region32
        $region31: #{tpu_custom_call.1} parent=11 // pred_region
          _
        $region32: #{tpu_custom_call.1} parent=11 // pred_fallthru
          _
        // Predicated region
        $region33: #{tpu_custom_call.1} parent=11 // pred_check
          %p334 = pneg %p173
        $region34: #{tpu_custom_call.1} parent=11 // pred_check_branch
          %336 = sbr.rel (%p334) target = $region36
        $region35: #{tpu_custom_call.1} parent=11 // pred_region
          _
        $region36: #{tpu_custom_call.1} parent=11 // pred_fallthru
          _
        // Predicated region
        $region37: #{tpu_custom_call.1} parent=11 // pred_check
          %p337 = pneg %p194
        $region38: #{tpu_custom_call.1} parent=11 // pred_check_branch
          %339 = sbr.rel (%p337) target = $region40
        $region39: #{tpu_custom_call.1} parent=11 // pred_region
          _
        $region40: #{tpu_custom_call.1} parent=11 // pred_fallthru
          _
        // Predicated region
        $region41: #{tpu_custom_call.1} parent=11 // pred_check
          %p340 = pneg %p215
        $region42: #{tpu_custom_call.1} parent=11 // pred_check_branch
          %342 = sbr.rel (%p340) target = $region44
        $region43: #{tpu_custom_call.1} parent=11 // pred_region
          _
        $region44: #{tpu_custom_call.1} parent=11 // pred_fallthru
          _
        // Predicated region
        $region45: #{tpu_custom_call.1} parent=11 // pred_check
          %p343 = pneg %p236
        $region46: #{tpu_custom_call.1} parent=11 // pred_check_branch
          %345 = sbr.rel (%p343) target = $region48
        $region47: #{tpu_custom_call.1} parent=11 // pred_region
          _
        $region48: #{tpu_custom_call.1} parent=11 // pred_fallthru
          _
        // Predicated region
        $region49: #{tpu_custom_call.1} parent=11 // pred_check
          %p346 = pneg %p257
        $region50: #{tpu_custom_call.1} parent=11 // pred_check_branch
          %348 = sbr.rel (%p346) target = $region52
        $region51: #{tpu_custom_call.1} parent=11 // pred_region
          _
        $region52: #{tpu_custom_call.1} parent=11 // pred_fallthru
          _
        // Predicated region
        $region53: #{tpu_custom_call.1} parent=11 // pred_check
          %p349 = pneg %p278
        $region54: #{tpu_custom_call.1} parent=11 // pred_check_branch
          %351 = sbr.rel (%p349) target = $region56
        $region55: #{tpu_custom_call.1} parent=11 // pred_region
          _
        $region56: #{tpu_custom_call.1} parent=11 // pred_fallthru
          _
      $region12: #{tpu_custom_call.1} parent=5 // pred_fallthru
        _
      %p352 = scmp.lt.s32.totalorder %s21, 2
      // Predicated region
      $region57: #{tpu_custom_call.1} parent=5 // pred_check
        %p353 = pneg %p352
      $region58: #{tpu_custom_call.1} parent=5 // pred_check_branch
        %355 = sbr.rel (%p353) target = $region60
      $region59: #{tpu_custom_call.1} parent=5 // pred_region
        // Predicated region
        $region61: #{tpu_custom_call.1} parent=59 // pred_check
          %p356 = pneg %p41
        $region62: #{tpu_custom_call.1} parent=59 // pred_check_branch
          %358 = sbr.rel (%p356) target = $region64
        $region63: #{tpu_custom_call.1} parent=59 // pred_region
          %p359 = scmp.lt.s32.totalorder %s21, 1
          %s360 = scalar_select %p359, %s21, 1
          %s361 = smul.addr %s360, 4
          %s362 = smul.addr %s361, 8
          %s363 = scalar_lea.vmem %s0, %s362
        $region64: #{tpu_custom_call.1} parent=59 // pred_fallthru
          _
      $region60: #{tpu_custom_call.1} parent=5 // pred_fallthru
        _
      %p364 = scmp.le.s32.totalorder 1, %s21
      %p365 = scmp.lt.s32.totalorder %s21, 3
      %p366 = pnand %p364, %p365
      %p367 = pneg %p366
      // Predicated region
      $region65: #{tpu_custom_call.1} parent=5 // pred_check
        _
      $region66: #{tpu_custom_call.1} parent=5 // pred_check_branch
        %369 = sbr.rel (%p366) target = $region68
      $region67: #{tpu_custom_call.1} parent=5 // pred_region
        %s370 = ssub.s32 %s21, 1
        %p371 = scmp.lt.s32.totalorder %s26, 1
        %s372 = scalar_select %p371, %s26, 1
        %s373 = smul.addr %s372, 4
        %s374 = smul.addr %s373, 8
        %s375 = scalar_lea.vmem %s0, %s374
        %p376 = pneg %p47
        %p377 = pneg %p44
        %p378 = pneg %p68
        %p379 = pneg %p65
        %p380 = pneg %p89
        %p381 = pneg %p86
        %p382 = pneg %p110
        %p383 = pneg %p107
        %p384 = pneg %p131
        %p385 = pneg %p128
        %p386 = pneg %p152
        %p387 = pneg %p149
        %p388 = pneg %p173
        %p389 = pneg %p170
        %p390 = pneg %p194
        %p391 = pneg %p191
        %p392 = pneg %p215
        %p393 = pneg %p212
        %p394 = pneg %p236
        %p395 = pneg %p233
        %p396 = pneg %p257
        %p397 = pneg %p254
        %p398 = pneg %p278
        %p399 = pneg %p275
        %p400 = pneg %p304
        %p401 = pneg %p301
        %s402 = sand.u32 %s291, 1
        %s403 = scalar_lea.sflag [#allocation3], %s402
        %s404 = sand.u32 %s291, 1
        %s405 = smul.addr %s404, 32
        %s406 = scalar_lea.vmem [#allocation2], %s405
        %p407 = scmp.lt.s32.totalorder %s26, 1
        %s408 = scalar_select %p407, %s26, 1
        %s409 = smul.addr %s408, 4
        %s410 = smul.addr %s409, 8
        %s411 = scalar_lea.vmem %s0, %s410
        %v412 = vld [vmem:[%s411] sm:$0xff]
        %v413 = vld [vmem:[%s411 + $0x8] sm:$0xff]
        %v414 = vld [vmem:[%s411 + $0x10] sm:$0xff]
        %v415 = vld [vmem:[%s411 + $0x18] sm:$0xff]
        %v416 = vld [vmem:[%s1] sm:$0xff]
        %v417 = vld [vmem:[%s1 + $0x8] sm:$0xff]
        %v418 = vld [vmem:[%s1 + $0x10] sm:$0xff]
        %v419 = vld [vmem:[%s1 + $0x18] sm:$0xff]
        %v420 = vld [vmem:[%s1 + $0x20] sm:$0xff]
        %v421 = vld [vmem:[%s1 + $0x28] sm:$0xff]
        %v422 = vld [vmem:[%s1 + $0x30] sm:$0xff]
        %v423 = vld [vmem:[%s1 + $0x38] sm:$0xff]
        %v424 = vld [vmem:[%s2] sm:$0xff]
        %v425 = vld [vmem:[%s2 + $0x8] sm:$0xff]
        %v426 = vld [vmem:[%s2 + $0x10] sm:$0xff]
        %v427 = vld [vmem:[%s2 + $0x18] sm:$0xff]
        %v428 = vld [vmem:[%s2 + $0x20] sm:$0xff]
        %v429 = vld [vmem:[%s2 + $0x28] sm:$0xff]
        %v430 = vld [vmem:[%s2 + $0x30] sm:$0xff]
        %v431 = vld [vmem:[%s2 + $0x38] sm:$0xff]
        %433 = vset.pattern.permute.xlu0 0
        %434 = vperm.xlu0 %433, %v424
        %v435 = vpop.permute.xlu0 %434
        %438 = vset.pattern.permute.xlu0 0
        %439 = vperm.xlu0 %438, %v425
        %v440 = vpop.permute.xlu0 %439
        %443 = vset.pattern.permute.xlu0 0
        %444 = vperm.xlu0 %443, %v426
        %v445 = vpop.permute.xlu0 %444
        %448 = vset.pattern.permute.xlu0 0
        %449 = vperm.xlu0 %448, %v427
        %v450 = vpop.permute.xlu0 %449
        %453 = vset.pattern.permute.xlu0 0
        %454 = vperm.xlu0 %453, %v428
        %v455 = vpop.permute.xlu0 %454
        %458 = vset.pattern.permute.xlu0 0
        %459 = vperm.xlu0 %458, %v429
        %v460 = vpop.permute.xlu0 %459
        %463 = vset.pattern.permute.xlu0 0
        %464 = vperm.xlu0 %463, %v430
        %v465 = vpop.permute.xlu0 %464
        %468 = vset.pattern.permute.xlu0 0
        %469 = vperm.xlu0 %468, %v431
        %v470 = vpop.permute.xlu0 %469
        %vm472 = vcmask 130048
        %v474 = vsel %vm472, %v416, 0
        %v477 = vsel %vm472, %v417, 0
        %v480 = vsel %vm472, %v418, 0
        %v483 = vsel %vm472, %v419, 0
        %v486 = vsel %vm472, %v420, 0
        %v489 = vsel %vm472, %v421, 0
        %v492 = vsel %vm472, %v422, 0
        %v495 = vsel %vm472, %v423, 0
        %497 = vmatprep.subr.mxu0 %v413
        %498 = vmatpush1.msra.mxu0 %v412
        %499 = vmatprep.subr.mxu0 %v415
        %500 = vmatpush1.msra.mxu0 %v414
        %501 = vmatprep.subr.mxu0 0.0
        %502 = vmatpush1.msra.mxu0 0.0
        %503 = vmatprep.subr.mxu0 0.0
        %504 = vmatpush1.msra.mxu0 0.0
        %505 = vmatprep.subr.mxu0 0.0
        %506 = vmatpush1.msra.mxu0 0.0
        %507 = vmatprep.subr.mxu0 0.0
        %508 = vmatpush1.msra.mxu0 0.0
        %509 = vmatprep.subr.mxu0 0.0
        %510 = vmatpush1.msra.mxu0 0.0
        %511 = vmatprep.subr.mxu0 0.0
        %512 = vmatpush1.msra.mxu0 0.0
        %513 = vmatprep.subr.mxu0 0.0
        %514 = vmatpush1.msra.mxu0 0.0
        %515 = vmatprep.subr.mxu0 0.0
        %516 = vmatpush1.msra.mxu0 0.0
        %517 = vmatprep.subr.mxu0 0.0
        %518 = vmatpush1.msra.mxu0 0.0
        %519 = vmatprep.subr.mxu0 0.0
        %520 = vmatpush1.msra.mxu0 0.0
        %521 = vmatprep.subr.mxu0 0.0
        %522 = vmatpush1.msra.mxu0 0.0
        %523 = vmatprep.subr.mxu0 0.0
        %524 = vmatpush1.msra.mxu0 0.0
        %525 = vmatprep.subr.mxu0 0.0
        %526 = vmatpush1.msra.mxu0 0.0
        %527 = vmatprep.subr.mxu0 0.0
        %528 = vmatpush1.msra.mxu0 0.0
        %529 = vmatprep.subr.mxu0 0.0
        %530 = vmatpush1.msra.mxu0 0.0
        %531 = vmatprep.subr.mxu0 0.0
        %532 = vmatpush1.msra.mxu0 0.0
        %533 = vmatprep.subr.mxu0 0.0
        %534 = vmatpush1.msra.mxu0 0.0
        %535 = vmatprep.subr.mxu0 0.0
        %536 = vmatpush1.msra.mxu0 0.0
        %537 = vmatprep.subr.mxu0 0.0
        %538 = vmatpush1.msra.mxu0 0.0
        %539 = vmatprep.subr.mxu0 0.0
        %540 = vmatpush1.msra.mxu0 0.0
        %541 = vmatprep.subr.mxu0 0.0
        %542 = vmatpush1.msra.mxu0 0.0
        %543 = vmatprep.subr.mxu0 0.0
        %544 = vmatpush1.msra.mxu0 0.0
        %545 = vmatprep.subr.mxu0 0.0
        %546 = vmatpush1.msra.mxu0 0.0
        %547 = vmatprep.subr.mxu0 0.0
        %548 = vmatpush1.msra.mxu0 0.0
        %549 = vmatprep.subr.mxu0 0.0
        %550 = vmatpush1.msra.mxu0 0.0
        %551 = vmatprep.subr.mxu0 0.0
        %552 = vmatpush1.msra.mxu0 0.0
        %553 = vmatprep.subr.mxu0 0.0
        %554 = vmatpush1.msra.mxu0 0.0
        %555 = vmatprep.subr.mxu0 0.0
        %556 = vmatpush1.msra.mxu0 0.0
        %557 = vmatprep.subr.mxu0 0.0
        %558 = vmatpush1.msra.mxu0 0.0
        %559 = vmatprep.subr.mxu0 0.0
        %560 = vmatpush1.msra.mxu0 0.0
        %561 = vmatprep.mubr.f32.mxu0 0.0
        %562 = vmatmul.mubr.f32.gmra.mrb[0].mxu0 %v474
        %v563 = vpop.f32.mrb[0].mxu0
        %v564 = vadd.f32 %v435, %v563
        %v565 = vpop.f32.mrb[0].mxu0
        %v566 = vadd.f32 %v435, %v565
        %567 = vmatprep.mubr.f32.mxu0 0.0
        %568 = vmatmul.mubr.f32.gmra.mrb[0].mxu0 %v477
        %v569 = vpop.f32.mrb[0].mxu0
        %v570 = vadd.f32 %v440, %v569
        %v571 = vpop.f32.mrb[0].mxu0
        %v572 = vadd.f32 %v440, %v571
        %573 = vmatprep.mubr.f32.mxu0 0.0
        %574 = vmatmul.mubr.f32.gmra.mrb[0].mxu0 %v480
        %v575 = vpop.f32.mrb[0].mxu0
        %v576 = vadd.f32 %v445, %v575
        %v577 = vpop.f32.mrb[0].mxu0
        %v578 = vadd.f32 %v445, %v577
        %579 = vmatprep.mubr.f32.mxu0 0.0
        %580 = vmatmul.mubr.f32.gmra.mrb[0].mxu0 %v483
        %v581 = vpop.f32.mrb[0].mxu0
        %v582 = vadd.f32 %v450, %v581
        %v583 = vpop.f32.mrb[0].mxu0
        %v584 = vadd.f32 %v450, %v583
        %585 = vmatprep.mubr.f32.mxu0 0.0
        %586 = vmatmul.mubr.f32.gmra.mrb[0].mxu0 %v486
        %v587 = vpop.f32.mrb[0].mxu0
        %v588 = vadd.f32 %v455, %v587
        %v589 = vpop.f32.mrb[0].mxu0
        %v590 = vadd.f32 %v455, %v589
        %591 = vmatprep.mubr.f32.mxu0 0.0
        %592 = vmatmul.mubr.f32.gmra.mrb[0].mxu0 %v489
        %v593 = vpop.f32.mrb[0].mxu0
        %v594 = vadd.f32 %v460, %v593
        %v595 = vpop.f32.mrb[0].mxu0
        %v596 = vadd.f32 %v460, %v595
        %597 = vmatprep.mubr.f32.mxu0 0.0
        %598 = vmatmul.mubr.f32.gmra.mrb[0].mxu0 %v492
        %v599 = vpop.f32.mrb[0].mxu0
        %v600 = vadd.f32 %v465, %v599
        %v601 = vpop.f32.mrb[0].mxu0
        %v602 = vadd.f32 %v465, %v601
        %603 = vmatprep.mubr.f32.mxu0 0.0
        %604 = vmatmul.mubr.f32.gmra.mrb[0].mxu0 %v495
        %v605 = vpop.f32.mrb[0].mxu0
        %v606 = vadd.f32 %v470, %v605
        %v607 = vpop.f32.mrb[0].mxu0
        %v608 = vadd.f32 %v470, %v607
        %609 = vdwg.mxu0
        %v610 = vmax.f32 %v564, 0.0
        %v611 = vmax.f32 %v566, 0.0
        %v612 = vmax.f32 %v570, 0.0
        %v613 = vmax.f32 %v572, 0.0
        %v614 = vmax.f32 %v576, 0.0
        %v615 = vmax.f32 %v578, 0.0
        %v616 = vmax.f32 %v582, 0.0
        %v617 = vmax.f32 %v584, 0.0
        %v618 = vmax.f32 %v588, 0.0
        %v619 = vmax.f32 %v590, 0.0
        %v620 = vmax.f32 %v594, 0.0
        %v621 = vmax.f32 %v596, 0.0
        %v622 = vmax.f32 %v600, 0.0
        %v623 = vmax.f32 %v602, 0.0
        %v624 = vmax.f32 %v606, 0.0
        %v625 = vmax.f32 %v608, 0.0
        %v626 = vmin.f32 %v610, 6.0
        %v627 = vmin.f32 %v611, 6.0
        %v628 = vmin.f32 %v612, 6.0
        %v629 = vmin.f32 %v613, 6.0
        %v630 = vmin.f32 %v614, 6.0
        %v631 = vmin.f32 %v615, 6.0
        %v632 = vmin.f32 %v616, 6.0
        %v633 = vmin.f32 %v617, 6.0
        %v634 = vmin.f32 %v618, 6.0
        %v635 = vmin.f32 %v619, 6.0
        %v636 = vmin.f32 %v620, 6.0
        %v637 = vmin.f32 %v621, 6.0
        %v638 = vmin.f32 %v622, 6.0
        %v639 = vmin.f32 %v623, 6.0
        %v640 = vmin.f32 %v624, 6.0
        %v641 = vmin.f32 %v625, 6.0
        %s642 = scalar_lea.vmem %s3, 256
        %v643 = vld [vmem:[%s642] sm:$0xff]
        %v644 = vld [vmem:[%s642 + $0x8] sm:$0xff]
        %v645 = vld [vmem:[%s642 + $0x10] sm:$0xff]
        %v646 = vld [vmem:[%s642 + $0x18] sm:$0xff]
        %v647 = vld [vmem:[%s642 + $0x20] sm:$0xff]
        %v648 = vld [vmem:[%s642 + $0x28] sm:$0xff]
        %v649 = vld [vmem:[%s642 + $0x30] sm:$0xff]
        %v650 = vld [vmem:[%s642 + $0x38] sm:$0xff]
        %652 = vset.pattern.permute.xlu0 0
        %653 = vperm.xlu0 %652, %v643
        %v654 = vpop.permute.xlu0 %653
        %657 = vset.pattern.permute.xlu0 0
        %658 = vperm.xlu0 %657, %v644
        %v659 = vpop.permute.xlu0 %658
        %662 = vset.pattern.permute.xlu0 0
        %663 = vperm.xlu0 %662, %v645
        %v664 = vpop.permute.xlu0 %663
        %667 = vset.pattern.permute.xlu0 0
        %668 = vperm.xlu0 %667, %v646
        %v669 = vpop.permute.xlu0 %668
        %672 = vset.pattern.permute.xlu0 0
        %673 = vperm.xlu0 %672, %v647
        %v674 = vpop.permute.xlu0 %673
        %677 = vset.pattern.permute.xlu0 0
        %678 = vperm.xlu0 %677, %v648
        %v679 = vpop.permute.xlu0 %678
        %682 = vset.pattern.permute.xlu0 0
        %683 = vperm.xlu0 %682, %v649
        %v684 = vpop.permute.xlu0 %683
        %687 = vset.pattern.permute.xlu0 0
        %688 = vperm.xlu0 %687, %v650
        %v689 = vpop.permute.xlu0 %688
        %v691 = vmul.f32 %v626, %v654
        %v692 = vmul.f32 %v627, %v654
        %v693 = vmul.f32 %v628, %v659
        %v694 = vmul.f32 %v629, %v659
        %v695 = vmul.f32 %v630, %v664
        %v696 = vmul.f32 %v631, %v664
        %v697 = vmul.f32 %v632, %v669
        %v698 = vmul.f32 %v633, %v669
        %v699 = vmul.f32 %v634, %v674
        %v700 = vmul.f32 %v635, %v674
        %v701 = vmul.f32 %v636, %v679
        %v702 = vmul.f32 %v637, %v679
        %v703 = vmul.f32 %v638, %v684
        %v704 = vmul.f32 %v639, %v684
        %v705 = vmul.f32 %v640, %v689
        %v706 = vmul.f32 %v641, %v689
        %707 = vrot.lane.b32.xlu0 %v626, 17
        %v708 = vpop.permute.xlu0 %707
        %709 = vrot.lane.b32.xlu0 %v628, 17
        %v710 = vpop.permute.xlu0 %709
        %711 = vrot.lane.b32.xlu0 %v630, 17
        %v712 = vpop.permute.xlu0 %711
        %713 = vrot.lane.b32.xlu0 %v632, 17
        %v714 = vpop.permute.xlu0 %713
        %715 = vrot.lane.b32.xlu0 %v634, 17
        %v716 = vpop.permute.xlu0 %715
        %717 = vrot.lane.b32.xlu0 %v636, 17
        %v718 = vpop.permute.xlu0 %717
        %719 = vrot.lane.b32.xlu0 %v638, 17
        %v720 = vpop.permute.xlu0 %719
        %721 = vrot.lane.b32.xlu0 %v640, 17
        %v722 = vpop.permute.xlu0 %721
        %723 = vrot.lane.b32.xlu0 %v627, 17
        %v724 = vpop.permute.xlu0 %723
        %725 = vrot.lane.b32.xlu0 %v629, 17
        %v726 = vpop.permute.xlu0 %725
        %727 = vrot.lane.b32.xlu0 %v631, 17
        %v728 = vpop.permute.xlu0 %727
        %729 = vrot.lane.b32.xlu0 %v633, 17
        %v730 = vpop.permute.xlu0 %729
        %731 = vrot.lane.b32.xlu0 %v635, 17
        %v732 = vpop.permute.xlu0 %731
        %733 = vrot.lane.b32.xlu0 %v637, 17
        %v734 = vpop.permute.xlu0 %733
        %735 = vrot.lane.b32.xlu0 %v639, 17
        %v736 = vpop.permute.xlu0 %735
        %737 = vrot.lane.b32.xlu0 %v641, 17
        %v738 = vpop.permute.xlu0 %737
        %v739 = vlaneseq
        %v740 = vand.u32 %v739, 127
        %vm741 = vcmp.lt.s32.totalorder %v740, 17
        %v742 = vsel %vm741, %v708, %v724
        %v743 = vsel %vm741, %v710, %v726
        %v744 = vsel %vm741, %v712, %v728
        %v745 = vsel %vm741, %v714, %v730
        %v746 = vsel %vm741, %v716, %v732
        %v747 = vsel %vm741, %v718, %v734
        %v748 = vsel %vm741, %v720, %v736
        %v749 = vsel %vm741, %v722, %v738
        %v750 = vsel %vm741, %v724, %v708
        %v751 = vsel %vm741, %v726, %v710
        %v752 = vsel %vm741, %v728, %v712
        %v753 = vsel %vm741, %v730, %v714
        %v754 = vsel %vm741, %v732, %v716
        %v755 = vsel %vm741, %v734, %v718
        %v756 = vsel %vm741, %v736, %v720
        %v757 = vsel %vm741, %v738, %v722
        %v758 = vld [vmem:[%s4] sm:$0x3]
        %v760 = vlaneseq
        %v761 = vshrl.u32 %v760, 7
        %v762 = vsub.s32 0, %v761
        %v763 = vrot.slane %v758, %v762
        %v764 = vlaneseq
        %v765 = vshrl.u32 %v764, 7
        %v766 = vsub.s32 1, %v765
        %v767 = vrot.slane %v758, %v766
        %v770 = vmul.f32 %v750, %v763
        %v771 = vmul.f32 %v742, %v767
        %v772 = vmul.f32 %v751, %v763
        %v773 = vmul.f32 %v743, %v767
        %v774 = vmul.f32 %v752, %v763
        %v775 = vmul.f32 %v744, %v767
        %v776 = vmul.f32 %v753, %v763
        %v777 = vmul.f32 %v745, %v767
        %v778 = vmul.f32 %v754, %v763
        %v779 = vmul.f32 %v746, %v767
        %v780 = vmul.f32 %v755, %v763
        %v781 = vmul.f32 %v747, %v767
        %v782 = vmul.f32 %v756, %v763
        %v783 = vmul.f32 %v748, %v767
        %v784 = vmul.f32 %v757, %v763
        %v785 = vmul.f32 %v749, %v767
        %v786 = vld [vmem:[%s3] sm:$0xff]
        %v787 = vld [vmem:[%s3 + $0x8] sm:$0xff]
        %v788 = vld [vmem:[%s3 + $0x10] sm:$0xff]
        %v789 = vld [vmem:[%s3 + $0x18] sm:$0xff]
        %v790 = vld [vmem:[%s3 + $0x20] sm:$0xff]
        %v791 = vld [vmem:[%s3 + $0x28] sm:$0xff]
        %v792 = vld [vmem:[%s3 + $0x30] sm:$0xff]
        %v793 = vld [vmem:[%s3 + $0x38] sm:$0xff]
        %795 = vset.pattern.permute.xlu0 0
        %796 = vperm.xlu0 %795, %v786
        %v797 = vpop.permute.xlu0 %796
        %800 = vset.pattern.permute.xlu0 0
        %801 = vperm.xlu0 %800, %v787
        %v802 = vpop.permute.xlu0 %801
        %805 = vset.pattern.permute.xlu0 0
        %806 = vperm.xlu0 %805, %v788
        %v807 = vpop.permute.xlu0 %806
        %810 = vset.pattern.permute.xlu0 0
        %811 = vperm.xlu0 %810, %v789
        %v812 = vpop.permute.xlu0 %811
        %815 = vset.pattern.permute.xlu0 0
        %816 = vperm.xlu0 %815, %v790
        %v817 = vpop.permute.xlu0 %816
        %820 = vset.pattern.permute.xlu0 0
        %821 = vperm.xlu0 %820, %v791
        %v822 = vpop.permute.xlu0 %821
        %825 = vset.pattern.permute.xlu0 0
        %826 = vperm.xlu0 %825, %v792
        %v827 = vpop.permute.xlu0 %826
        %830 = vset.pattern.permute.xlu0 0
        %831 = vperm.xlu0 %830, %v793
        %v832 = vpop.permute.xlu0 %831
        %v834 = vmul.f32 %v770, %v797
        %v835 = vmul.f32 %v771, %v797
        %v836 = vmul.f32 %v772, %v802
        %v837 = vmul.f32 %v773, %v802
        %v838 = vmul.f32 %v774, %v807
        %v839 = vmul.f32 %v775, %v807
        %v840 = vmul.f32 %v776, %v812
        %v841 = vmul.f32 %v777, %v812
        %v842 = vmul.f32 %v778, %v817
        %v843 = vmul.f32 %v779, %v817
        %v844 = vmul.f32 %v780, %v822
        %v845 = vmul.f32 %v781, %v822
        %v846 = vmul.f32 %v782, %v827
        %v847 = vmul.f32 %v783, %v827
        %v848 = vmul.f32 %v784, %v832
        %v849 = vmul.f32 %v785, %v832
        %v850 = vadd.f32 %v691, %v834
        %v851 = vadd.f32 %v692, %v835
        %v852 = vadd.f32 %v693, %v836
        %v853 = vadd.f32 %v694, %v837
        %v854 = vadd.f32 %v695, %v838
        %v855 = vadd.f32 %v696, %v839
        %v856 = vadd.f32 %v697, %v840
        %v857 = vadd.f32 %v698, %v841
        %v858 = vadd.f32 %v699, %v842
        %v859 = vadd.f32 %v700, %v843
        %v860 = vadd.f32 %v701, %v844
        %v861 = vadd.f32 %v702, %v845
        %v862 = vadd.f32 %v703, %v846
        %v863 = vadd.f32 %v704, %v847
        %v864 = vadd.f32 %v705, %v848
        %v865 = vadd.f32 %v706, %v849
        %866 = vrot.lane.b32.xlu0 %v626, 16
        %v867 = vpop.permute.xlu0 %866
        %868 = vrot.lane.b32.xlu0 %v628, 16
        %v869 = vpop.permute.xlu0 %868
        %870 = vrot.lane.b32.xlu0 %v630, 16
        %v871 = vpop.permute.xlu0 %870
        %872 = vrot.lane.b32.xlu0 %v632, 16
        %v873 = vpop.permute.xlu0 %872
        %874 = vrot.lane.b32.xlu0 %v634, 16
        %v875 = vpop.permute.xlu0 %874
        %876 = vrot.lane.b32.xlu0 %v636, 16
        %v877 = vpop.permute.xlu0 %876
        %878 = vrot.lane.b32.xlu0 %v638, 16
        %v879 = vpop.permute.xlu0 %878
        %880 = vrot.lane.b32.xlu0 %v640, 16
        %v881 = vpop.permute.xlu0 %880
        %882 = vrot.lane.b32.xlu0 %v627, 16
        %v883 = vpop.permute.xlu0 %882
        %884 = vrot.lane.b32.xlu0 %v629, 16
        %v885 = vpop.permute.xlu0 %884
        %886 = vrot.lane.b32.xlu0 %v631, 16
        %v887 = vpop.permute.xlu0 %886
        %888 = vrot.lane.b32.xlu0 %v633, 16
        %v889 = vpop.permute.xlu0 %888
        %890 = vrot.lane.b32.xlu0 %v635, 16
        %v891 = vpop.permute.xlu0 %890
        %892 = vrot.lane.b32.xlu0 %v637, 16
        %v893 = vpop.permute.xlu0 %892
        %894 = vrot.lane.b32.xlu0 %v639, 16
        %v895 = vpop.permute.xlu0 %894
        %896 = vrot.lane.b32.xlu0 %v641, 16
        %v897 = vpop.permute.xlu0 %896
        %vm898 = vcmp.lt.s32.totalorder %v740, 16
        %v899 = vsel %vm898, %v867, %v883
        %v900 = vsel %vm898, %v869, %v885
        %v901 = vsel %vm898, %v871, %v887
        %v902 = vsel %vm898, %v873, %v889
        %v903 = vsel %vm898, %v875, %v891
        %v904 = vsel %vm898, %v877, %v893
        %v905 = vsel %vm898, %v879, %v895
        %v906 = vsel %vm898, %v881, %v897
        %v907 = vsel %vm898, %v883, %v867
        %v908 = vsel %vm898, %v885, %v869
        %v909 = vsel %vm898, %v887, %v871
        %v910 = vsel %vm898, %v889, %v873
        %v911 = vsel %vm898, %v891, %v875
        %v912 = vsel %vm898, %v893, %v877
        %v913 = vsel %vm898, %v895, %v879
        %v914 = vsel %vm898, %v897, %v881
        %s915 = scalar_lea.vmem %s4, 2
        %v916 = vld [vmem:[%s915] sm:$0x3]
        %v918 = vlaneseq
        %v919 = vshrl.u32 %v918, 7
        %v920 = vsub.s32 0, %v919
        %v921 = vrot.slane %v916, %v920
        %v922 = vlaneseq
        %v923 = vshrl.u32 %v922, 7
        %v924 = vsub.s32 1, %v923
        %v925 = vrot.slane %v916, %v924
        %v928 = vmul.f32 %v907, %v921
        %v929 = vmul.f32 %v899, %v925
        %v930 = vmul.f32 %v908, %v921
        %v931 = vmul.f32 %v900, %v925
        %v932 = vmul.f32 %v909, %v921
        %v933 = vmul.f32 %v901, %v925
        %v934 = vmul.f32 %v910, %v921
        %v935 = vmul.f32 %v902, %v925
        %v936 = vmul.f32 %v911, %v921
        %v937 = vmul.f32 %v903, %v925
        %v938 = vmul.f32 %v912, %v921
        %v939 = vmul.f32 %v904, %v925
        %v940 = vmul.f32 %v913, %v921
        %v941 = vmul.f32 %v905, %v925
        %v942 = vmul.f32 %v914, %v921
        %v943 = vmul.f32 %v906, %v925
        %s944 = scalar_lea.vmem %s3, 64
        %v945 = vld [vmem:[%s944] sm:$0xff]
        %v946 = vld [vmem:[%s944 + $0x8] sm:$0xff]
        %v947 = vld [vmem:[%s944 + $0x10] sm:$0xff]
        %v948 = vld [vmem:[%s944 + $0x18] sm:$0xff]
        %v949 = vld [vmem:[%s944 + $0x20] sm:$0xff]
        %v950 = vld [vmem:[%s944 + $0x28] sm:$0xff]
        %v951 = vld [vmem:[%s944 + $0x30] sm:$0xff]
        %v952 = vld [vmem:[%s944 + $0x38] sm:$0xff]
        %954 = vset.pattern.permute.xlu0 0
        %955 = vperm.xlu0 %954, %v945
        %v956 = vpop.permute.xlu0 %955
        %959 = vset.pattern.permute.xlu0 0
        %960 = vperm.xlu0 %959, %v946
        %v961 = vpop.permute.xlu0 %960
        %964 = vset.pattern.permute.xlu0 0
        %965 = vperm.xlu0 %964, %v947
        %v966 = vpop.permute.xlu0 %965
        %969 = vset.pattern.permute.xlu0 0
        %970 = vperm.xlu0 %969, %v948
        %v971 = vpop.permute.xlu0 %970
        %974 = vset.pattern.permute.xlu0 0
        %975 = vperm.xlu0 %974, %v949
        %v976 = vpop.permute.xlu0 %975
        %979 = vset.pattern.permute.xlu0 0
        %980 = vperm.xlu0 %979, %v950
        %v981 = vpop.permute.xlu0 %980
        %984 = vset.pattern.permute.xlu0 0
        %985 = vperm.xlu0 %984, %v951
        %v986 = vpop.permute.xlu0 %985
        %989 = vset.pattern.permute.xlu0 0
        %990 = vperm.xlu0 %989, %v952
        %v991 = vpop.permute.xlu0 %990
        %v993 = vmul.f32 %v928, %v956
        %v994 = vmul.f32 %v929, %v956
        %v995 = vmul.f32 %v930, %v961
        %v996 = vmul.f32 %v931, %v961
        %v997 = vmul.f32 %v932, %v966
        %v998 = vmul.f32 %v933, %v966
        %v999 = vmul.f32 %v934, %v971
        %v1000 = vmul.f32 %v935, %v971
        %v1001 = vmul.f32 %v936, %v976
        %v1002 = vmul.f32 %v937, %v976
        %v1003 = vmul.f32 %v938, %v981
        %v1004 = vmul.f32 %v939, %v981
        %v1005 = vmul.f32 %v940, %v986
        %v1006 = vmul.f32 %v941, %v986
        %v1007 = vmul.f32 %v942, %v991
        %v1008 = vmul.f32 %v943, %v991
        %v1009 = vadd.f32 %v850, %v993
        %v1010 = vadd.f32 %v851, %v994
        %v1011 = vadd.f32 %v852, %v995
        %v1012 = vadd.f32 %v853, %v996
        %v1013 = vadd.f32 %v854, %v997
        %v1014 = vadd.f32 %v855, %v998
        %v1015 = vadd.f32 %v856, %v999
        %v1016 = vadd.f32 %v857, %v1000
        %v1017 = vadd.f32 %v858, %v1001
        %v1018 = vadd.f32 %v859, %v1002
        %v1019 = vadd.f32 %v860, %v1003
        %v1020 = vadd.f32 %v861, %v1004
        %v1021 = vadd.f32 %v862, %v1005
        %v1022 = vadd.f32 %v863, %v1006
        %v1023 = vadd.f32 %v864, %v1007
        %v1024 = vadd.f32 %v865, %v1008
        %1025 = vrot.lane.b32.xlu0 %v626, 15
        %v1026 = vpop.permute.xlu0 %1025
        %1027 = vrot.lane.b32.xlu0 %v628, 15
        %v1028 = vpop.permute.xlu0 %1027
        %1029 = vrot.lane.b32.xlu0 %v630, 15
        %v1030 = vpop.permute.xlu0 %1029
        %1031 = vrot.lane.b32.xlu0 %v632, 15
        %v1032 = vpop.permute.xlu0 %1031
        %1033 = vrot.lane.b32.xlu0 %v634, 15
        %v1034 = vpop.permute.xlu0 %1033
        %1035 = vrot.lane.b32.xlu0 %v636, 15
        %v1036 = vpop.permute.xlu0 %1035
        %1037 = vrot.lane.b32.xlu0 %v638, 15
        %v1038 = vpop.permute.xlu0 %1037
        %1039 = vrot.lane.b32.xlu0 %v640, 15
        %v1040 = vpop.permute.xlu0 %1039
        %1041 = vrot.lane.b32.xlu0 %v627, 15
        %v1042 = vpop.permute.xlu0 %1041
        %1043 = vrot.lane.b32.xlu0 %v629, 15
        %v1044 = vpop.permute.xlu0 %1043
        %1045 = vrot.lane.b32.xlu0 %v631, 15
        %v1046 = vpop.permute.xlu0 %1045
        %1047 = vrot.lane.b32.xlu0 %v633, 15
        %v1048 = vpop.permute.xlu0 %1047
        %1049 = vrot.lane.b32.xlu0 %v635, 15
        %v1050 = vpop.permute.xlu0 %1049
        %1051 = vrot.lane.b32.xlu0 %v637, 15
        %v1052 = vpop.permute.xlu0 %1051
        %1053 = vrot.lane.b32.xlu0 %v639, 15
        %v1054 = vpop.permute.xlu0 %1053
        %1055 = vrot.lane.b32.xlu0 %v641, 15
        %v1056 = vpop.permute.xlu0 %1055
        %vm1057 = vcmp.lt.s32.totalorder %v740, 15
        %v1058 = vsel %vm1057, %v1026, %v1042
        %v1059 = vsel %vm1057, %v1028, %v1044
        %v1060 = vsel %vm1057, %v1030, %v1046
        %v1061 = vsel %vm1057, %v1032, %v1048
        %v1062 = vsel %vm1057, %v1034, %v1050
        %v1063 = vsel %vm1057, %v1036, %v1052
        %v1064 = vsel %vm1057, %v1038, %v1054
        %v1065 = vsel %vm1057, %v1040, %v1056
        %v1066 = vsel %vm1057, %v1042, %v1026
        %v1067 = vsel %vm1057, %v1044, %v1028
        %v1068 = vsel %vm1057, %v1046, %v1030
        %v1069 = vsel %vm1057, %v1048, %v1032
        %v1070 = vsel %vm1057, %v1050, %v1034
        %v1071 = vsel %vm1057, %v1052, %v1036
        %v1072 = vsel %vm1057, %v1054, %v1038
        %v1073 = vsel %vm1057, %v1056, %v1040
        %s1074 = scalar_lea.vmem %s4, 4
        %v1075 = vld [vmem:[%s1074] sm:$0x3]
        %v1077 = vlaneseq
        %v1078 = vshrl.u32 %v1077, 7
        %v1079 = vsub.s32 0, %v1078
        %v1080 = vrot.slane %v1075, %v1079
        %v1081 = vlaneseq
        %v1082 = vshrl.u32 %v1081, 7
        %v1083 = vsub.s32 1, %v1082
        %v1084 = vrot.slane %v1075, %v1083
        %v1087 = vmul.f32 %v1066, %v1080
        %v1088 = vmul.f32 %v1058, %v1084
        %v1089 = vmul.f32 %v1067, %v1080
        %v1090 = vmul.f32 %v1059, %v1084
        %v1091 = vmul.f32 %v1068, %v1080
        %v1092 = vmul.f32 %v1060, %v1084
        %v1093 = vmul.f32 %v1069, %v1080
        %v1094 = vmul.f32 %v1061, %v1084
        %v1095 = vmul.f32 %v1070, %v1080
        %v1096 = vmul.f32 %v1062, %v1084
        %v1097 = vmul.f32 %v1071, %v1080
        %v1098 = vmul.f32 %v1063, %v1084
        %v1099 = vmul.f32 %v1072, %v1080
        %v1100 = vmul.f32 %v1064, %v1084
        %v1101 = vmul.f32 %v1073, %v1080
        %v1102 = vmul.f32 %v1065, %v1084
        %s1103 = scalar_lea.vmem %s3, 128
        %v1104 = vld [vmem:[%s1103] sm:$0xff]
        %v1105 = vld [vmem:[%s1103 + $0x8] sm:$0xff]
        %v1106 = vld [vmem:[%s1103 + $0x10] sm:$0xff]
        %v1107 = vld [vmem:[%s1103 + $0x18] sm:$0xff]
        %v1108 = vld [vmem:[%s1103 + $0x20] sm:$0xff]
        %v1109 = vld [vmem:[%s1103 + $0x28] sm:$0xff]
        %v1110 = vld [vmem:[%s1103 + $0x30] sm:$0xff]
        %v1111 = vld [vmem:[%s1103 + $0x38] sm:$0xff]
        %1113 = vset.pattern.permute.xlu0 0
        %1114 = vperm.xlu0 %1113, %v1104
        %v1115 = vpop.permute.xlu0 %1114
        %1118 = vset.pattern.permute.xlu0 0
        %1119 = vperm.xlu0 %1118, %v1105
        %v1120 = vpop.permute.xlu0 %1119
        %1123 = vset.pattern.permute.xlu0 0
        %1124 = vperm.xlu0 %1123, %v1106
        %v1125 = vpop.permute.xlu0 %1124
        %1128 = vset.pattern.permute.xlu0 0
        %1129 = vperm.xlu0 %1128, %v1107
        %v1130 = vpop.permute.xlu0 %1129
        %1133 = vset.pattern.permute.xlu0 0
        %1134 = vperm.xlu0 %1133, %v1108
        %v1135 = vpop.permute.xlu0 %1134
        %1138 = vset.pattern.permute.xlu0 0
        %1139 = vperm.xlu0 %1138, %v1109
        %v1140 = vpop.permute.xlu0 %1139
        %1143 = vset.pattern.permute.xlu0 0
        %1144 = vperm.xlu0 %1143, %v1110
        %v1145 = vpop.permute.xlu0 %1144
        %1148 = vset.pattern.permute.xlu0 0
        %1149 = vperm.xlu0 %1148, %v1111
        %v1150 = vpop.permute.xlu0 %1149
        %v1152 = vmul.f32 %v1087, %v1115
        %v1153 = vmul.f32 %v1088, %v1115
        %v1154 = vmul.f32 %v1089, %v1120
        %v1155 = vmul.f32 %v1090, %v1120
        %v1156 = vmul.f32 %v1091, %v1125
        %v1157 = vmul.f32 %v1092, %v1125
        %v1158 = vmul.f32 %v1093, %v1130
        %v1159 = vmul.f32 %v1094, %v1130
        %v1160 = vmul.f32 %v1095, %v1135
        %v1161 = vmul.f32 %v1096, %v1135
        %v1162 = vmul.f32 %v1097, %v1140
        %v1163 = vmul.f32 %v1098, %v1140
        %v1164 = vmul.f32 %v1099, %v1145
        %v1165 = vmul.f32 %v1100, %v1145
        %v1166 = vmul.f32 %v1101, %v1150
        %v1167 = vmul.f32 %v1102, %v1150
        %v1168 = vadd.f32 %v1009, %v1152
        %v1169 = vadd.f32 %v1010, %v1153
        %v1170 = vadd.f32 %v1011, %v1154
        %v1171 = vadd.f32 %v1012, %v1155
        %v1172 = vadd.f32 %v1013, %v1156
        %v1173 = vadd.f32 %v1014, %v1157
        %v1174 = vadd.f32 %v1015, %v1158
        %v1175 = vadd.f32 %v1016, %v1159
        %v1176 = vadd.f32 %v1017, %v1160
        %v1177 = vadd.f32 %v1018, %v1161
        %v1178 = vadd.f32 %v1019, %v1162
        %v1179 = vadd.f32 %v1020, %v1163
        %v1180 = vadd.f32 %v1021, %v1164
        %v1181 = vadd.f32 %v1022, %v1165
        %v1182 = vadd.f32 %v1023, %v1166
        %v1183 = vadd.f32 %v1024, %v1167
        %1184 = vrot.lane.b32.xlu0 %v626, 1
        %v1185 = vpop.permute.xlu0 %1184
        %1186 = vrot.lane.b32.xlu0 %v628, 1
        %v1187 = vpop.permute.xlu0 %1186
        %1188 = vrot.lane.b32.xlu0 %v630, 1
        %v1189 = vpop.permute.xlu0 %1188
        %1190 = vrot.lane.b32.xlu0 %v632, 1
        %v1191 = vpop.permute.xlu0 %1190
        %1192 = vrot.lane.b32.xlu0 %v634, 1
        %v1193 = vpop.permute.xlu0 %1192
        %1194 = vrot.lane.b32.xlu0 %v636, 1
        %v1195 = vpop.permute.xlu0 %1194
        %1196 = vrot.lane.b32.xlu0 %v638, 1
        %v1197 = vpop.permute.xlu0 %1196
        %1198 = vrot.lane.b32.xlu0 %v640, 1
        %v1199 = vpop.permute.xlu0 %1198
        %1200 = vrot.lane.b32.xlu0 %v627, 1
        %v1201 = vpop.permute.xlu0 %1200
        %1202 = vrot.lane.b32.xlu0 %v629, 1
        %v1203 = vpop.permute.xlu0 %1202
        %1204 = vrot.lane.b32.xlu0 %v631, 1
        %v1205 = vpop.permute.xlu0 %1204
        %1206 = vrot.lane.b32.xlu0 %v633, 1
        %v1207 = vpop.permute.xlu0 %1206
        %1208 = vrot.lane.b32.xlu0 %v635, 1
        %v1209 = vpop.permute.xlu0 %1208
        %1210 = vrot.lane.b32.xlu0 %v637, 1
        %v1211 = vpop.permute.xlu0 %1210
        %1212 = vrot.lane.b32.xlu0 %v639, 1
        %v1213 = vpop.permute.xlu0 %1212
        %1214 = vrot.lane.b32.xlu0 %v641, 1
        %v1215 = vpop.permute.xlu0 %1214
        %vm1216 = vcmp.lt.s32.totalorder %v740, 1
        %v1217 = vsel %vm1216, %v1185, %v1201
        %v1218 = vsel %vm1216, %v1187, %v1203
        %v1219 = vsel %vm1216, %v1189, %v1205
        %v1220 = vsel %vm1216, %v1191, %v1207
        %v1221 = vsel %vm1216, %v1193, %v1209
        %v1222 = vsel %vm1216, %v1195, %v1211
        %v1223 = vsel %vm1216, %v1197, %v1213
        %v1224 = vsel %vm1216, %v1199, %v1215
        %v1225 = vsel %vm1216, %v1201, %v1185
        %v1226 = vsel %vm1216, %v1203, %v1187
        %v1227 = vsel %vm1216, %v1205, %v1189
        %v1228 = vsel %vm1216, %v1207, %v1191
        %v1229 = vsel %vm1216, %v1209, %v1193
        %v1230 = vsel %vm1216, %v1211, %v1195
        %v1231 = vsel %vm1216, %v1213, %v1197
        %v1232 = vsel %vm1216, %v1215, %v1199
        %s1233 = scalar_lea.vmem %s4, 6
        %v1234 = vld [vmem:[%s1233] sm:$0x3]
        %v1236 = vlaneseq
        %v1237 = vshrl.u32 %v1236, 7
        %v1238 = vsub.s32 0, %v1237
        %v1239 = vrot.slane %v1234, %v1238
        %v1240 = vlaneseq
        %v1241 = vshrl.u32 %v1240, 7
        %v1242 = vsub.s32 1, %v1241
        %v1243 = vrot.slane %v1234, %v1242
        %v1246 = vmul.f32 %v1225, %v1239
        %v1247 = vmul.f32 %v1217, %v1243
        %v1248 = vmul.f32 %v1226, %v1239
        %v1249 = vmul.f32 %v1218, %v1243
        %v1250 = vmul.f32 %v1227, %v1239
        %v1251 = vmul.f32 %v1219, %v1243
        %v1252 = vmul.f32 %v1228, %v1239
        %v1253 = vmul.f32 %v1220, %v1243
        %v1254 = vmul.f32 %v1229, %v1239
        %v1255 = vmul.f32 %v1221, %v1243
        %v1256 = vmul.f32 %v1230, %v1239
        %v1257 = vmul.f32 %v1222, %v1243
        %v1258 = vmul.f32 %v1231, %v1239
        %v1259 = vmul.f32 %v1223, %v1243
        %v1260 = vmul.f32 %v1232, %v1239
        %v1261 = vmul.f32 %v1224, %v1243
        %s1262 = scalar_lea.vmem %s3, 192
        %v1263 = vld [vmem:[%s1262] sm:$0xff]
        %v1264 = vld [vmem:[%s1262 + $0x8] sm:$0xff]
        %v1265 = vld [vmem:[%s1262 + $0x10] sm:$0xff]
        %v1266 = vld [vmem:[%s1262 + $0x18] sm:$0xff]
        %v1267 = vld [vmem:[%s1262 + $0x20] sm:$0xff]
        %v1268 = vld [vmem:[%s1262 + $0x28] sm:$0xff]
        %v1269 = vld [vmem:[%s1262 + $0x30] sm:$0xff]
        %v1270 = vld [vmem:[%s1262 + $0x38] sm:$0xff]
        %1272 = vset.pattern.permute.xlu0 0
        %1273 = vperm.xlu0 %1272, %v1263
        %v1274 = vpop.permute.xlu0 %1273
        %1277 = vset.pattern.permute.xlu0 0
        %1278 = vperm.xlu0 %1277, %v1264
        %v1279 = vpop.permute.xlu0 %1278
        %1282 = vset.pattern.permute.xlu0 0
        %1283 = vperm.xlu0 %1282, %v1265
        %v1284 = vpop.permute.xlu0 %1283
        %1287 = vset.pattern.permute.xlu0 0
        %1288 = vperm.xlu0 %1287, %v1266
        %v1289 = vpop.permute.xlu0 %1288
        %1292 = vset.pattern.permute.xlu0 0
        %1293 = vperm.xlu0 %1292, %v1267
        %v1294 = vpop.permute.xlu0 %1293
        %1297 = vset.pattern.permute.xlu0 0
        %1298 = vperm.xlu0 %1297, %v1268
        %v1299 = vpop.permute.xlu0 %1298
        %1302 = vset.pattern.permute.xlu0 0
        %1303 = vperm.xlu0 %1302, %v1269
        %v1304 = vpop.permute.xlu0 %1303
        %1307 = vset.pattern.permute.xlu0 0
        %1308 = vperm.xlu0 %1307, %v1270
        %v1309 = vpop.permute.xlu0 %1308
        %v1311 = vmul.f32 %v1246, %v1274
        %v1312 = vmul.f32 %v1247, %v1274
        %v1313 = vmul.f32 %v1248, %v1279
        %v1314 = vmul.f32 %v1249, %v1279
        %v1315 = vmul.f32 %v1250, %v1284
        %v1316 = vmul.f32 %v1251, %v1284
        %v1317 = vmul.f32 %v1252, %v1289
        %v1318 = vmul.f32 %v1253, %v1289
        %v1319 = vmul.f32 %v1254, %v1294
        %v1320 = vmul.f32 %v1255, %v1294
        %v1321 = vmul.f32 %v1256, %v1299
        %v1322 = vmul.f32 %v1257, %v1299
        %v1323 = vmul.f32 %v1258, %v1304
        %v1324 = vmul.f32 %v1259, %v1304
        %v1325 = vmul.f32 %v1260, %v1309
        %v1326 = vmul.f32 %v1261, %v1309
        %v1327 = vadd.f32 %v1168, %v1311
        %v1328 = vadd.f32 %v1169, %v1312
        %v1329 = vadd.f32 %v1170, %v1313
        %v1330 = vadd.f32 %v1171, %v1314
        %v1331 = vadd.f32 %v1172, %v1315
        %v1332 = vadd.f32 %v1173, %v1316
        %v1333 = vadd.f32 %v1174, %v1317
        %v1334 = vadd.f32 %v1175, %v1318
        %v1335 = vadd.f32 %v1176, %v1319
        %v1336 = vadd.f32 %v1177, %v1320
        %v1337 = vadd.f32 %v1178, %v1321
        %v1338 = vadd.f32 %v1179, %v1322
        %v1339 = vadd.f32 %v1180, %v1323
        %v1340 = vadd.f32 %v1181, %v1324
        %v1341 = vadd.f32 %v1182, %v1325
        %v1342 = vadd.f32 %v1183, %v1326
        %1343 = vrot.lane.b32.xlu0 %v626, 127
        %v1344 = vpop.permute.xlu0 %1343
        %1345 = vrot.lane.b32.xlu0 %v628, 127
        %v1346 = vpop.permute.xlu0 %1345
        %1347 = vrot.lane.b32.xlu0 %v630, 127
        %v1348 = vpop.permute.xlu0 %1347
        %1349 = vrot.lane.b32.xlu0 %v632, 127
        %v1350 = vpop.permute.xlu0 %1349
        %1351 = vrot.lane.b32.xlu0 %v634, 127
        %v1352 = vpop.permute.xlu0 %1351
        %1353 = vrot.lane.b32.xlu0 %v636, 127
        %v1354 = vpop.permute.xlu0 %1353
        %1355 = vrot.lane.b32.xlu0 %v638, 127
        %v1356 = vpop.permute.xlu0 %1355
        %1357 = vrot.lane.b32.xlu0 %v640, 127
        %v1358 = vpop.permute.xlu0 %1357
        %1359 = vrot.lane.b32.xlu0 %v627, 127
        %v1360 = vpop.permute.xlu0 %1359
        %1361 = vrot.lane.b32.xlu0 %v629, 127
        %v1362 = vpop.permute.xlu0 %1361
        %1363 = vrot.lane.b32.xlu0 %v631, 127
        %v1364 = vpop.permute.xlu0 %1363
        %1365 = vrot.lane.b32.xlu0 %v633, 127
        %v1366 = vpop.permute.xlu0 %1365
        %1367 = vrot.lane.b32.xlu0 %v635, 127
        %v1368 = vpop.permute.xlu0 %1367
        %1369 = vrot.lane.b32.xlu0 %v637, 127
        %v1370 = vpop.permute.xlu0 %1369
        %1371 = vrot.lane.b32.xlu0 %v639, 127
        %v1372 = vpop.permute.xlu0 %1371
        %1373 = vrot.lane.b32.xlu0 %v641, 127
        %v1374 = vpop.permute.xlu0 %1373
        %vm1375 = vcmp.lt.s32.totalorder %v740, 127
        %v1376 = vsel %vm1375, %v1344, %v1360
        %v1377 = vsel %vm1375, %v1346, %v1362
        %v1378 = vsel %vm1375, %v1348, %v1364
        %v1379 = vsel %vm1375, %v1350, %v1366
        %v1380 = vsel %vm1375, %v1352, %v1368
        %v1381 = vsel %vm1375, %v1354, %v1370
        %v1382 = vsel %vm1375, %v1356, %v1372
        %v1383 = vsel %vm1375, %v1358, %v1374
        %v1384 = vsel %vm1375, %v1360, %v1344
        %v1385 = vsel %vm1375, %v1362, %v1346
        %v1386 = vsel %vm1375, %v1364, %v1348
        %v1387 = vsel %vm1375, %v1366, %v1350
        %v1388 = vsel %vm1375, %v1368, %v1352
        %v1389 = vsel %vm1375, %v1370, %v1354
        %v1390 = vsel %vm1375, %v1372, %v1356
        %v1391 = vsel %vm1375, %v1374, %v1358
        %s1392 = scalar_lea.vmem %s4, 10
        %v1393 = vld [vmem:[%s1392] sm:$0x3]
        %v1395 = vlaneseq
        %v1396 = vshrl.u32 %v1395, 7
        %v1397 = vsub.s32 0, %v1396
        %v1398 = vrot.slane %v1393, %v1397
        %v1399 = vlaneseq
        %v1400 = vshrl.u32 %v1399, 7
        %v1401 = vsub.s32 1, %v1400
        %v1402 = vrot.slane %v1393, %v1401
        %v1405 = vmul.f32 %v1376, %v1398
        %v1406 = vmul.f32 %v1384, %v1402
        %v1407 = vmul.f32 %v1377, %v1398
        %v1408 = vmul.f32 %v1385, %v1402
        %v1409 = vmul.f32 %v1378, %v1398
        %v1410 = vmul.f32 %v1386, %v1402
        %v1411 = vmul.f32 %v1379, %v1398
        %v1412 = vmul.f32 %v1387, %v1402
        %v1413 = vmul.f32 %v1380, %v1398
        %v1414 = vmul.f32 %v1388, %v1402
        %v1415 = vmul.f32 %v1381, %v1398
        %v1416 = vmul.f32 %v1389, %v1402
        %v1417 = vmul.f32 %v1382, %v1398
        %v1418 = vmul.f32 %v1390, %v1402
        %v1419 = vmul.f32 %v1383, %v1398
        %v1420 = vmul.f32 %v1391, %v1402
        %s1421 = scalar_lea.vmem %s3, 320
        %v1422 = vld [vmem:[%s1421] sm:$0xff]
        %v1423 = vld [vmem:[%s1421 + $0x8] sm:$0xff]
        %v1424 = vld [vmem:[%s1421 + $0x10] sm:$0xff]
        %v1425 = vld [vmem:[%s1421 + $0x18] sm:$0xff]
        %v1426 = vld [vmem:[%s1421 + $0x20] sm:$0xff]
        %v1427 = vld [vmem:[%s1421 + $0x28] sm:$0xff]
        %v1428 = vld [vmem:[%s1421 + $0x30] sm:$0xff]
        %v1429 = vld [vmem:[%s1421 + $0x38] sm:$0xff]
        %1431 = vset.pattern.permute.xlu0 0
        %1432 = vperm.xlu0 %1431, %v1422
        %v1433 = vpop.permute.xlu0 %1432
        %1436 = vset.pattern.permute.xlu0 0
        %1437 = vperm.xlu0 %1436, %v1423
        %v1438 = vpop.permute.xlu0 %1437
        %1441 = vset.pattern.permute.xlu0 0
        %1442 = vperm.xlu0 %1441, %v1424
        %v1443 = vpop.permute.xlu0 %1442
        %1446 = vset.pattern.permute.xlu0 0
        %1447 = vperm.xlu0 %1446, %v1425
        %v1448 = vpop.permute.xlu0 %1447
        %1451 = vset.pattern.permute.xlu0 0
        %1452 = vperm.xlu0 %1451, %v1426
        %v1453 = vpop.permute.xlu0 %1452
        %1456 = vset.pattern.permute.xlu0 0
        %1457 = vperm.xlu0 %1456, %v1427
        %v1458 = vpop.permute.xlu0 %1457
        %1461 = vset.pattern.permute.xlu0 0
        %1462 = vperm.xlu0 %1461, %v1428
        %v1463 = vpop.permute.xlu0 %1462
        %1466 = vset.pattern.permute.xlu0 0
        %1467 = vperm.xlu0 %1466, %v1429
        %v1468 = vpop.permute.xlu0 %1467
        %v1470 = vmul.f32 %v1405, %v1433
        %v1471 = vmul.f32 %v1406, %v1433
        %v1472 = vmul.f32 %v1407, %v1438
        %v1473 = vmul.f32 %v1408, %v1438
        %v1474 = vmul.f32 %v1409, %v1443
        %v1475 = vmul.f32 %v1410, %v1443
        %v1476 = vmul.f32 %v1411, %v1448
        %v1477 = vmul.f32 %v1412, %v1448
        %v1478 = vmul.f32 %v1413, %v1453
        %v1479 = vmul.f32 %v1414, %v1453
        %v1480 = vmul.f32 %v1415, %v1458
        %v1481 = vmul.f32 %v1416, %v1458
        %v1482 = vmul.f32 %v1417, %v1463
        %v1483 = vmul.f32 %v1418, %v1463
        %v1484 = vmul.f32 %v1419, %v1468
        %v1485 = vmul.f32 %v1420, %v1468
        %v1486 = vadd.f32 %v1327, %v1470
        %v1487 = vadd.f32 %v1328, %v1471
        %v1488 = vadd.f32 %v1329, %v1472
        %v1489 = vadd.f32 %v1330, %v1473
        %v1490 = vadd.f32 %v1331, %v1474
        %v1491 = vadd.f32 %v1332, %v1475
        %v1492 = vadd.f32 %v1333, %v1476
        %v1493 = vadd.f32 %v1334, %v1477
        %v1494 = vadd.f32 %v1335, %v1478
        %v1495 = vadd.f32 %v1336, %v1479
        %v1496 = vadd.f32 %v1337, %v1480
        %v1497 = vadd.f32 %v1338, %v1481
        %v1498 = vadd.f32 %v1339, %v1482
        %v1499 = vadd.f32 %v1340, %v1483
        %v1500 = vadd.f32 %v1341, %v1484
        %v1501 = vadd.f32 %v1342, %v1485
        %1502 = vrot.lane.b32.xlu0 %v626, 113
        %v1503 = vpop.permute.xlu0 %1502
        %1504 = vrot.lane.b32.xlu0 %v628, 113
        %v1505 = vpop.permute.xlu0 %1504
        %1506 = vrot.lane.b32.xlu0 %v630, 113
        %v1507 = vpop.permute.xlu0 %1506
        %1508 = vrot.lane.b32.xlu0 %v632, 113
        %v1509 = vpop.permute.xlu0 %1508
        %1510 = vrot.lane.b32.xlu0 %v634, 113
        %v1511 = vpop.permute.xlu0 %1510
        %1512 = vrot.lane.b32.xlu0 %v636, 113
        %v1513 = vpop.permute.xlu0 %1512
        %1514 = vrot.lane.b32.xlu0 %v638, 113
        %v1515 = vpop.permute.xlu0 %1514
        %1516 = vrot.lane.b32.xlu0 %v640, 113
        %v1517 = vpop.permute.xlu0 %1516
        %1518 = vrot.lane.b32.xlu0 %v627, 113
        %v1519 = vpop.permute.xlu0 %1518
        %1520 = vrot.lane.b32.xlu0 %v629, 113
        %v1521 = vpop.permute.xlu0 %1520
        %1522 = vrot.lane.b32.xlu0 %v631, 113
        %v1523 = vpop.permute.xlu0 %1522
        %1524 = vrot.lane.b32.xlu0 %v633, 113
        %v1525 = vpop.permute.xlu0 %1524
        %1526 = vrot.lane.b32.xlu0 %v635, 113
        %v1527 = vpop.permute.xlu0 %1526
        %1528 = vrot.lane.b32.xlu0 %v637, 113
        %v1529 = vpop.permute.xlu0 %1528
        %1530 = vrot.lane.b32.xlu0 %v639, 113
        %v1531 = vpop.permute.xlu0 %1530
        %1532 = vrot.lane.b32.xlu0 %v641, 113
        %v1533 = vpop.permute.xlu0 %1532
        %vm1534 = vcmp.lt.s32.totalorder %v740, 113
        %v1535 = vsel %vm1534, %v1503, %v1519
        %v1536 = vsel %vm1534, %v1505, %v1521
        %v1537 = vsel %vm1534, %v1507, %v1523
        %v1538 = vsel %vm1534, %v1509, %v1525
        %v1539 = vsel %vm1534, %v1511, %v1527
        %v1540 = vsel %vm1534, %v1513, %v1529
        %v1541 = vsel %vm1534, %v1515, %v1531
        %v1542 = vsel %vm1534, %v1517, %v1533
        %v1543 = vsel %vm1534, %v1519, %v1503
        %v1544 = vsel %vm1534, %v1521, %v1505
        %v1545 = vsel %vm1534, %v1523, %v1507
        %v1546 = vsel %vm1534, %v1525, %v1509
        %v1547 = vsel %vm1534, %v1527, %v1511
        %v1548 = vsel %vm1534, %v1529, %v1513
        %v1549 = vsel %vm1534, %v1531, %v1515
        %v1550 = vsel %vm1534, %v1533, %v1517
        %s1551 = scalar_lea.vmem %s4, 12
        %v1552 = vld [vmem:[%s1551] sm:$0x3]
        %v1554 = vlaneseq
        %v1555 = vshrl.u32 %v1554, 7
        %v1556 = vsub.s32 0, %v1555
        %v1557 = vrot.slane %v1552, %v1556
        %v1558 = vlaneseq
        %v1559 = vshrl.u32 %v1558, 7
        %v1560 = vsub.s32 1, %v1559
        %v1561 = vrot.slane %v1552, %v1560
        %v1564 = vmul.f32 %v1535, %v1557
        %v1565 = vmul.f32 %v1543, %v1561
        %v1566 = vmul.f32 %v1536, %v1557
        %v1567 = vmul.f32 %v1544, %v1561
        %v1568 = vmul.f32 %v1537, %v1557
        %v1569 = vmul.f32 %v1545, %v1561
        %v1570 = vmul.f32 %v1538, %v1557
        %v1571 = vmul.f32 %v1546, %v1561
        %v1572 = vmul.f32 %v1539, %v1557
        %v1573 = vmul.f32 %v1547, %v1561
        %v1574 = vmul.f32 %v1540, %v1557
        %v1575 = vmul.f32 %v1548, %v1561
        %v1576 = vmul.f32 %v1541, %v1557
        %v1577 = vmul.f32 %v1549, %v1561
        %v1578 = vmul.f32 %v1542, %v1557
        %v1579 = vmul.f32 %v1550, %v1561
        %s1580 = scalar_lea.vmem %s3, 384
        %v1581 = vld [vmem:[%s1580] sm:$0xff]
        %v1582 = vld [vmem:[%s1580 + $0x8] sm:$0xff]
        %v1583 = vld [vmem:[%s1580 + $0x10] sm:$0xff]
        %v1584 = vld [vmem:[%s1580 + $0x18] sm:$0xff]
        %v1585 = vld [vmem:[%s1580 + $0x20] sm:$0xff]
        %v1586 = vld [vmem:[%s1580 + $0x28] sm:$0xff]
        %v1587 = vld [vmem:[%s1580 + $0x30] sm:$0xff]
        %v1588 = vld [vmem:[%s1580 + $0x38] sm:$0xff]
        %1590 = vset.pattern.permute.xlu0 0
        %1591 = vperm.xlu0 %1590, %v1581
        %v1592 = vpop.permute.xlu0 %1591
        %1595 = vset.pattern.permute.xlu0 0
        %1596 = vperm.xlu0 %1595, %v1582
        %v1597 = vpop.permute.xlu0 %1596
        %1600 = vset.pattern.permute.xlu0 0
        %1601 = vperm.xlu0 %1600, %v1583
        %v1602 = vpop.permute.xlu0 %1601
        %1605 = vset.pattern.permute.xlu0 0
        %1606 = vperm.xlu0 %1605, %v1584
        %v1607 = vpop.permute.xlu0 %1606
        %1610 = vset.pattern.permute.xlu0 0
        %1611 = vperm.xlu0 %1610, %v1585
        %v1612 = vpop.permute.xlu0 %1611
        %1615 = vset.pattern.permute.xlu0 0
        %1616 = vperm.xlu0 %1615, %v1586
        %v1617 = vpop.permute.xlu0 %1616
        %1620 = vset.pattern.permute.xlu0 0
        %1621 = vperm.xlu0 %1620, %v1587
        %v1622 = vpop.permute.xlu0 %1621
        %1625 = vset.pattern.permute.xlu0 0
        %1626 = vperm.xlu0 %1625, %v1588
        %v1627 = vpop.permute.xlu0 %1626
        %v1629 = vmul.f32 %v1564, %v1592
        %v1630 = vmul.f32 %v1565, %v1592
        %v1631 = vmul.f32 %v1566, %v1597
        %v1632 = vmul.f32 %v1567, %v1597
        %v1633 = vmul.f32 %v1568, %v1602
        %v1634 = vmul.f32 %v1569, %v1602
        %v1635 = vmul.f32 %v1570, %v1607
        %v1636 = vmul.f32 %v1571, %v1607
        %v1637 = vmul.f32 %v1572, %v1612
        %v1638 = vmul.f32 %v1573, %v1612
        %v1639 = vmul.f32 %v1574, %v1617
        %v1640 = vmul.f32 %v1575, %v1617
        %v1641 = vmul.f32 %v1576, %v1622
        %v1642 = vmul.f32 %v1577, %v1622
        %v1643 = vmul.f32 %v1578, %v1627
        %v1644 = vmul.f32 %v1579, %v1627
        %v1645 = vadd.f32 %v1486, %v1629
        %v1646 = vadd.f32 %v1487, %v1630
        %v1647 = vadd.f32 %v1488, %v1631
        %v1648 = vadd.f32 %v1489, %v1632
        %v1649 = vadd.f32 %v1490, %v1633
        %v1650 = vadd.f32 %v1491, %v1634
        %v1651 = vadd.f32 %v1492, %v1635
        %v1652 = vadd.f32 %v1493, %v1636
        %v1653 = vadd.f32 %v1494, %v1637
        %v1654 = vadd.f32 %v1495, %v1638
        %v1655 = vadd.f32 %v1496, %v1639
        %v1656 = vadd.f32 %v1497, %v1640
        %v1657 = vadd.f32 %v1498, %v1641
        %v1658 = vadd.f32 %v1499, %v1642
        %v1659 = vadd.f32 %v1500, %v1643
        %v1660 = vadd.f32 %v1501, %v1644
        %1661 = vrot.lane.b32.xlu0 %v626, 112
        %v1662 = vpop.permute.xlu0 %1661
        %1663 = vrot.lane.b32.xlu0 %v628, 112
        %v1664 = vpop.permute.xlu0 %1663
        %1665 = vrot.lane.b32.xlu0 %v630, 112
        %v1666 = vpop.permute.xlu0 %1665
        %1667 = vrot.lane.b32.xlu0 %v632, 112
        %v1668 = vpop.permute.xlu0 %1667
        %1669 = vrot.lane.b32.xlu0 %v634, 112
        %v1670 = vpop.permute.xlu0 %1669
        %1671 = vrot.lane.b32.xlu0 %v636, 112
        %v1672 = vpop.permute.xlu0 %1671
        %1673 = vrot.lane.b32.xlu0 %v638, 112
        %v1674 = vpop.permute.xlu0 %1673
        %1675 = vrot.lane.b32.xlu0 %v640, 112
        %v1676 = vpop.permute.xlu0 %1675
        %1677 = vrot.lane.b32.xlu0 %v627, 112
        %v1678 = vpop.permute.xlu0 %1677
        %1679 = vrot.lane.b32.xlu0 %v629, 112
        %v1680 = vpop.permute.xlu0 %1679
        %1681 = vrot.lane.b32.xlu0 %v631, 112
        %v1682 = vpop.permute.xlu0 %1681
        %1683 = vrot.lane.b32.xlu0 %v633, 112
        %v1684 = vpop.permute.xlu0 %1683
        %1685 = vrot.lane.b32.xlu0 %v635, 112
        %v1686 = vpop.permute.xlu0 %1685
        %1687 = vrot.lane.b32.xlu0 %v637, 112
        %v1688 = vpop.permute.xlu0 %1687
        %1689 = vrot.lane.b32.xlu0 %v639, 112
        %v1690 = vpop.permute.xlu0 %1689
        %1691 = vrot.lane.b32.xlu0 %v641, 112
        %v1692 = vpop.permute.xlu0 %1691
        %vm1693 = vcmp.lt.s32.totalorder %v740, 112
        %v1694 = vsel %vm1693, %v1662, %v1678
        %v1695 = vsel %vm1693, %v1664, %v1680
        %v1696 = vsel %vm1693, %v1666, %v1682
        %v1697 = vsel %vm1693, %v1668, %v1684
        %v1698 = vsel %vm1693, %v1670, %v1686
        %v1699 = vsel %vm1693, %v1672, %v1688
        %v1700 = vsel %vm1693, %v1674, %v1690
        %v1701 = vsel %vm1693, %v1676, %v1692
        %v1702 = vsel %vm1693, %v1678, %v1662
        %v1703 = vsel %vm1693, %v1680, %v1664
        %v1704 = vsel %vm1693, %v1682, %v1666
        %v1705 = vsel %vm1693, %v1684, %v1668
        %v1706 = vsel %vm1693, %v1686, %v1670
        %v1707 = vsel %vm1693, %v1688, %v1672
        %v1708 = vsel %vm1693, %v1690, %v1674
        %v1709 = vsel %vm1693, %v1692, %v1676
        %s1710 = scalar_lea.vmem %s4, 14
        %v1711 = vld [vmem:[%s1710] sm:$0x3]
        %v1713 = vlaneseq
        %v1714 = vshrl.u32 %v1713, 7
        %v1715 = vsub.s32 0, %v1714
        %v1716 = vrot.slane %v1711, %v1715
        %v1717 = vlaneseq
        %v1718 = vshrl.u32 %v1717, 7
        %v1719 = vsub.s32 1, %v1718
        %v1720 = vrot.slane %v1711, %v1719
        %v1723 = vmul.f32 %v1694, %v1716
        %v1724 = vmul.f32 %v1702, %v1720
        %v1725 = vmul.f32 %v1695, %v1716
        %v1726 = vmul.f32 %v1703, %v1720
        %v1727 = vmul.f32 %v1696, %v1716
        %v1728 = vmul.f32 %v1704, %v1720
        %v1729 = vmul.f32 %v1697, %v1716
        %v1730 = vmul.f32 %v1705, %v1720
        %v1731 = vmul.f32 %v1698, %v1716
        %v1732 = vmul.f32 %v1706, %v1720
        %v1733 = vmul.f32 %v1699, %v1716
        %v1734 = vmul.f32 %v1707, %v1720
        %v1735 = vmul.f32 %v1700, %v1716
        %v1736 = vmul.f32 %v1708, %v1720
        %v1737 = vmul.f32 %v1701, %v1716
        %v1738 = vmul.f32 %v1709, %v1720
        %s1739 = scalar_lea.vmem %s3, 448
        %v1740 = vld [vmem:[%s1739] sm:$0xff]
        %v1741 = vld [vmem:[%s1739 + $0x8] sm:$0xff]
        %v1742 = vld [vmem:[%s1739 + $0x10] sm:$0xff]
        %v1743 = vld [vmem:[%s1739 + $0x18] sm:$0xff]
        %v1744 = vld [vmem:[%s1739 + $0x20] sm:$0xff]
        %v1745 = vld [vmem:[%s1739 + $0x28] sm:$0xff]
        %v1746 = vld [vmem:[%s1739 + $0x30] sm:$0xff]
        %v1747 = vld [vmem:[%s1739 + $0x38] sm:$0xff]
        %1749 = vset.pattern.permute.xlu0 0
        %1750 = vperm.xlu0 %1749, %v1740
        %v1751 = vpop.permute.xlu0 %1750
        %1754 = vset.pattern.permute.xlu0 0
        %1755 = vperm.xlu0 %1754, %v1741
        %v1756 = vpop.permute.xlu0 %1755
        %1759 = vset.pattern.permute.xlu0 0
        %1760 = vperm.xlu0 %1759, %v1742
        %v1761 = vpop.permute.xlu0 %1760
        %1764 = vset.pattern.permute.xlu0 0
        %1765 = vperm.xlu0 %1764, %v1743
        %v1766 = vpop.permute.xlu0 %1765
        %1769 = vset.pattern.permute.xlu0 0
        %1770 = vperm.xlu0 %1769, %v1744
        %v1771 = vpop.permute.xlu0 %1770
        %1774 = vset.pattern.permute.xlu0 0
        %1775 = vperm.xlu0 %1774, %v1745
        %v1776 = vpop.permute.xlu0 %1775
        %1779 = vset.pattern.permute.xlu0 0
        %1780 = vperm.xlu0 %1779, %v1746
        %v1781 = vpop.permute.xlu0 %1780
        %1784 = vset.pattern.permute.xlu0 0
        %1785 = vperm.xlu0 %1784, %v1747
        %v1786 = vpop.permute.xlu0 %1785
        %v1788 = vmul.f32 %v1723, %v1751
        %v1789 = vmul.f32 %v1724, %v1751
        %v1790 = vmul.f32 %v1725, %v1756
        %v1791 = vmul.f32 %v1726, %v1756
        %v1792 = vmul.f32 %v1727, %v1761
        %v1793 = vmul.f32 %v1728, %v1761
        %v1794 = vmul.f32 %v1729, %v1766
        %v1795 = vmul.f32 %v1730, %v1766
        %v1796 = vmul.f32 %v1731, %v1771
        %v1797 = vmul.f32 %v1732, %v1771
        %v1798 = vmul.f32 %v1733, %v1776
        %v1799 = vmul.f32 %v1734, %v1776
        %v1800 = vmul.f32 %v1735, %v1781
        %v1801 = vmul.f32 %v1736, %v1781
        %v1802 = vmul.f32 %v1737, %v1786
        %v1803 = vmul.f32 %v1738, %v1786
        %v1804 = vadd.f32 %v1645, %v1788
        %v1805 = vadd.f32 %v1646, %v1789
        %v1806 = vadd.f32 %v1647, %v1790
        %v1807 = vadd.f32 %v1648, %v1791
        %v1808 = vadd.f32 %v1649, %v1792
        %v1809 = vadd.f32 %v1650, %v1793
        %v1810 = vadd.f32 %v1651, %v1794
        %v1811 = vadd.f32 %v1652, %v1795
        %v1812 = vadd.f32 %v1653, %v1796
        %v1813 = vadd.f32 %v1654, %v1797
        %v1814 = vadd.f32 %v1655, %v1798
        %v1815 = vadd.f32 %v1656, %v1799
        %v1816 = vadd.f32 %v1657, %v1800
        %v1817 = vadd.f32 %v1658, %v1801
        %v1818 = vadd.f32 %v1659, %v1802
        %v1819 = vadd.f32 %v1660, %v1803
        %1820 = vrot.lane.b32.xlu0 %v626, 111
        %v1821 = vpop.permute.xlu0 %1820
        %1822 = vrot.lane.b32.xlu0 %v628, 111
        %v1823 = vpop.permute.xlu0 %1822
        %1824 = vrot.lane.b32.xlu0 %v630, 111
        %v1825 = vpop.permute.xlu0 %1824
        %1826 = vrot.lane.b32.xlu0 %v632, 111
        %v1827 = vpop.permute.xlu0 %1826
        %1828 = vrot.lane.b32.xlu0 %v634, 111
        %v1829 = vpop.permute.xlu0 %1828
        %1830 = vrot.lane.b32.xlu0 %v636, 111
        %v1831 = vpop.permute.xlu0 %1830
        %1832 = vrot.lane.b32.xlu0 %v638, 111
        %v1833 = vpop.permute.xlu0 %1832
        %1834 = vrot.lane.b32.xlu0 %v640, 111
        %v1835 = vpop.permute.xlu0 %1834
        %1836 = vrot.lane.b32.xlu0 %v627, 111
        %v1837 = vpop.permute.xlu0 %1836
        %1838 = vrot.lane.b32.xlu0 %v629, 111
        %v1839 = vpop.permute.xlu0 %1838
        %1840 = vrot.lane.b32.xlu0 %v631, 111
        %v1841 = vpop.permute.xlu0 %1840
        %1842 = vrot.lane.b32.xlu0 %v633, 111
        %v1843 = vpop.permute.xlu0 %1842
        %1844 = vrot.lane.b32.xlu0 %v635, 111
        %v1845 = vpop.permute.xlu0 %1844
        %1846 = vrot.lane.b32.xlu0 %v637, 111
        %v1847 = vpop.permute.xlu0 %1846
        %1848 = vrot.lane.b32.xlu0 %v639, 111
        %v1849 = vpop.permute.xlu0 %1848
        %1850 = vrot.lane.b32.xlu0 %v641, 111
        %v1851 = vpop.permute.xlu0 %1850
        %vm1852 = vcmp.lt.s32.totalorder %v740, 111
        %v1853 = vsel %vm1852, %v1821, %v1837
        %v1854 = vsel %vm1852, %v1823, %v1839
        %v1855 = vsel %vm1852, %v1825, %v1841
        %v1856 = vsel %vm1852, %v1827, %v1843
        %v1857 = vsel %vm1852, %v1829, %v1845
        %v1858 = vsel %vm1852, %v1831, %v1847
        %v1859 = vsel %vm1852, %v1833, %v1849
        %v1860 = vsel %vm1852, %v1835, %v1851
        %v1861 = vsel %vm1852, %v1837, %v1821
        %v1862 = vsel %vm1852, %v1839, %v1823
        %v1863 = vsel %vm1852, %v1841, %v1825
        %v1864 = vsel %vm1852, %v1843, %v1827
        %v1865 = vsel %vm1852, %v1845, %v1829
        %v1866 = vsel %vm1852, %v1847, %v1831
        %v1867 = vsel %vm1852, %v1849, %v1833
        %v1868 = vsel %vm1852, %v1851, %v1835
        %s1869 = scalar_lea.vmem %s4, 16
        %v1870 = vld [vmem:[%s1869] sm:$0x3]
        %v1872 = vlaneseq
        %v1873 = vshrl.u32 %v1872, 7
        %v1874 = vsub.s32 0, %v1873
        %v1875 = vrot.slane %v1870, %v1874
        %v1876 = vlaneseq
        %v1877 = vshrl.u32 %v1876, 7
        %v1878 = vsub.s32 1, %v1877
        %v1879 = vrot.slane %v1870, %v1878
        %v1882 = vmul.f32 %v1853, %v1875
        %v1883 = vmul.f32 %v1861, %v1879
        %v1884 = vmul.f32 %v1854, %v1875
        %v1885 = vmul.f32 %v1862, %v1879
        %v1886 = vmul.f32 %v1855, %v1875
        %v1887 = vmul.f32 %v1863, %v1879
        %v1888 = vmul.f32 %v1856, %v1875
        %v1889 = vmul.f32 %v1864, %v1879
        %v1890 = vmul.f32 %v1857, %v1875
        %v1891 = vmul.f32 %v1865, %v1879
        %v1892 = vmul.f32 %v1858, %v1875
        %v1893 = vmul.f32 %v1866, %v1879
        %v1894 = vmul.f32 %v1859, %v1875
        %v1895 = vmul.f32 %v1867, %v1879
        %v1896 = vmul.f32 %v1860, %v1875
        %v1897 = vmul.f32 %v1868, %v1879
        %s1898 = scalar_lea.vmem %s3, 512
        %v1899 = vld [vmem:[%s1898] sm:$0xff]
        %v1900 = vld [vmem:[%s1898 + $0x8] sm:$0xff]
        %v1901 = vld [vmem:[%s1898 + $0x10] sm:$0xff]
        %v1902 = vld [vmem:[%s1898 + $0x18] sm:$0xff]
        %v1903 = vld [vmem:[%s1898 + $0x20] sm:$0xff]
        %v1904 = vld [vmem:[%s1898 + $0x28] sm:$0xff]
        %v1905 = vld [vmem:[%s1898 + $0x30] sm:$0xff]
        %v1906 = vld [vmem:[%s1898 + $0x38] sm:$0xff]
        %1908 = vset.pattern.permute.xlu0 0
        %1909 = vperm.xlu0 %1908, %v1899
        %v1910 = vpop.permute.xlu0 %1909
        %1913 = vset.pattern.permute.xlu0 0
        %1914 = vperm.xlu0 %1913, %v1900
        %v1915 = vpop.permute.xlu0 %1914
        %1918 = vset.pattern.permute.xlu0 0
        %1919 = vperm.xlu0 %1918, %v1901
        %v1920 = vpop.permute.xlu0 %1919
        %1923 = vset.pattern.permute.xlu0 0
        %1924 = vperm.xlu0 %1923, %v1902
        %v1925 = vpop.permute.xlu0 %1924
        %1928 = vset.pattern.permute.xlu0 0
        %1929 = vperm.xlu0 %1928, %v1903
        %v1930 = vpop.permute.xlu0 %1929
        %1933 = vset.pattern.permute.xlu0 0
        %1934 = vperm.xlu0 %1933, %v1904
        %v1935 = vpop.permute.xlu0 %1934
        %1938 = vset.pattern.permute.xlu0 0
        %1939 = vperm.xlu0 %1938, %v1905
        %v1940 = vpop.permute.xlu0 %1939
        %1943 = vset.pattern.permute.xlu0 0
        %1944 = vperm.xlu0 %1943, %v1906
        %v1945 = vpop.permute.xlu0 %1944
        %v1947 = vmul.f32 %v1882, %v1910
        %v1948 = vmul.f32 %v1883, %v1910
        %v1949 = vmul.f32 %v1884, %v1915
        %v1950 = vmul.f32 %v1885, %v1915
        %v1951 = vmul.f32 %v1886, %v1920
        %v1952 = vmul.f32 %v1887, %v1920
        %v1953 = vmul.f32 %v1888, %v1925
        %v1954 = vmul.f32 %v1889, %v1925
        %v1955 = vmul.f32 %v1890, %v1930
        %v1956 = vmul.f32 %v1891, %v1930
        %v1957 = vmul.f32 %v1892, %v1935
        %v1958 = vmul.f32 %v1893, %v1935
        %v1959 = vmul.f32 %v1894, %v1940
        %v1960 = vmul.f32 %v1895, %v1940
        %v1961 = vmul.f32 %v1896, %v1945
        %v1962 = vmul.f32 %v1897, %v1945
        %v1963 = vadd.f32 %v1804, %v1947
        %v1964 = vadd.f32 %v1805, %v1948
        %v1965 = vadd.f32 %v1806, %v1949
        %v1966 = vadd.f32 %v1807, %v1950
        %v1967 = vadd.f32 %v1808, %v1951
        %v1968 = vadd.f32 %v1809, %v1952
        %v1969 = vadd.f32 %v1810, %v1953
        %v1970 = vadd.f32 %v1811, %v1954
        %v1971 = vadd.f32 %v1812, %v1955
        %v1972 = vadd.f32 %v1813, %v1956
        %v1973 = vadd.f32 %v1814, %v1957
        %v1974 = vadd.f32 %v1815, %v1958
        %v1975 = vadd.f32 %v1816, %v1959
        %v1976 = vadd.f32 %v1817, %v1960
        %v1977 = vadd.f32 %v1818, %v1961
        %v1978 = vadd.f32 %v1819, %v1962
        %v1979 = vld [vmem:[%s5] sm:$0xff]
        %v1980 = vld [vmem:[%s5 + $0x8] sm:$0xff]
        %v1981 = vld [vmem:[%s5 + $0x10] sm:$0xff]
        %v1982 = vld [vmem:[%s5 + $0x18] sm:$0xff]
        %v1983 = vld [vmem:[%s5 + $0x20] sm:$0xff]
        %v1984 = vld [vmem:[%s5 + $0x28] sm:$0xff]
        %v1985 = vld [vmem:[%s5 + $0x30] sm:$0xff]
        %v1986 = vld [vmem:[%s5 + $0x38] sm:$0xff]
        %1988 = vset.pattern.permute.xlu0 0
        %1989 = vperm.xlu0 %1988, %v1979
        %v1990 = vpop.permute.xlu0 %1989
        %1993 = vset.pattern.permute.xlu0 0
        %1994 = vperm.xlu0 %1993, %v1980
        %v1995 = vpop.permute.xlu0 %1994
        %1998 = vset.pattern.permute.xlu0 0
        %1999 = vperm.xlu0 %1998, %v1981
        %v2000 = vpop.permute.xlu0 %1999
        %2003 = vset.pattern.permute.xlu0 0
        %2004 = vperm.xlu0 %2003, %v1982
        %v2005 = vpop.permute.xlu0 %2004
        %2008 = vset.pattern.permute.xlu0 0
        %2009 = vperm.xlu0 %2008, %v1983
        %v2010 = vpop.permute.xlu0 %2009
        %2013 = vset.pattern.permute.xlu0 0
        %2014 = vperm.xlu0 %2013, %v1984
        %v2015 = vpop.permute.xlu0 %2014
        %2018 = vset.pattern.permute.xlu0 0
        %2019 = vperm.xlu0 %2018, %v1985
        %v2020 = vpop.permute.xlu0 %2019
        %2023 = vset.pattern.permute.xlu0 0
        %2024 = vperm.xlu0 %2023, %v1986
        %v2025 = vpop.permute.xlu0 %2024
        %v2027 = vadd.f32 %v1963, %v1990
        %v2028 = vadd.f32 %v1964, %v1990
        %v2029 = vadd.f32 %v1965, %v1995
        %v2030 = vadd.f32 %v1966, %v1995
        %v2031 = vadd.f32 %v1967, %v2000
        %v2032 = vadd.f32 %v1968, %v2000
        %v2033 = vadd.f32 %v1969, %v2005
        %v2034 = vadd.f32 %v1970, %v2005
        %v2035 = vadd.f32 %v1971, %v2010
        %v2036 = vadd.f32 %v1972, %v2010
        %v2037 = vadd.f32 %v1973, %v2015
        %v2038 = vadd.f32 %v1974, %v2015
        %v2039 = vadd.f32 %v1975, %v2020
        %v2040 = vadd.f32 %v1976, %v2020
        %v2041 = vadd.f32 %v1977, %v2025
        %v2042 = vadd.f32 %v1978, %v2025
        %v2043 = vmax.f32 %v2027, 0.0
        %v2044 = vmax.f32 %v2028, 0.0
        %v2045 = vmax.f32 %v2029, 0.0
        %v2046 = vmax.f32 %v2030, 0.0
        %v2047 = vmax.f32 %v2031, 0.0
        %v2048 = vmax.f32 %v2032, 0.0
        %v2049 = vmax.f32 %v2033, 0.0
        %v2050 = vmax.f32 %v2034, 0.0
        %v2051 = vmax.f32 %v2035, 0.0
        %v2052 = vmax.f32 %v2036, 0.0
        %v2053 = vmax.f32 %v2037, 0.0
        %v2054 = vmax.f32 %v2038, 0.0
        %v2055 = vmax.f32 %v2039, 0.0
        %v2056 = vmax.f32 %v2040, 0.0
        %v2057 = vmax.f32 %v2041, 0.0
        %v2058 = vmax.f32 %v2042, 0.0
        %v2059 = vmin.f32 %v2043, 6.0
        %v2060 = vmin.f32 %v2044, 6.0
        %v2061 = vmin.f32 %v2045, 6.0
        %v2062 = vmin.f32 %v2046, 6.0
        %v2063 = vmin.f32 %v2047, 6.0
        %v2064 = vmin.f32 %v2048, 6.0
        %v2065 = vmin.f32 %v2049, 6.0
        %v2066 = vmin.f32 %v2050, 6.0
        %v2067 = vmin.f32 %v2051, 6.0
        %v2068 = vmin.f32 %v2052, 6.0
        %v2069 = vmin.f32 %v2053, 6.0
        %v2070 = vmin.f32 %v2054, 6.0
        %v2071 = vmin.f32 %v2055, 6.0
        %v2072 = vmin.f32 %v2056, 6.0
        %v2073 = vmin.f32 %v2057, 6.0
        %v2074 = vmin.f32 %v2058, 6.0
        %v2075 = vld [vmem:[%s6] sm:$0xff]
        %v2076 = vld [vmem:[%s6 + $0x8] sm:$0xff]
        %v2077 = vld [vmem:[%s7] sm:$0xff]
        %v2078 = vld [vmem:[%s7 + $0x8] sm:$0xff]
        %2080 = vset.pattern.permute.xlu0 0
        %2081 = vperm.xlu0 %2080, %v2077
        %v2082 = vpop.permute.xlu0 %2081
        %2085 = vset.pattern.permute.xlu0 0
        %2086 = vperm.xlu0 %2085, %v2078
        %v2087 = vpop.permute.xlu0 %2086
        %vm2089 = vcmask 523264
        %v2091 = vsel %vm2089, %v2075, 0
        %v2094 = vsel %vm2089, %v2076, 0
        %2096 = vmatprep.subr.mxu0 %v2060
        %2097 = vmatpush1.msra.mxu0 %v2059
        %2098 = vmatprep.subr.mxu0 %v2062
        %2099 = vmatpush1.msra.mxu0 %v2061
        %2100 = vmatprep.subr.mxu0 %v2064
        %2101 = vmatpush1.msra.mxu0 %v2063
        %2102 = vmatprep.subr.mxu0 %v2066
        %2103 = vmatpush1.msra.mxu0 %v2065
        %2104 = vmatprep.subr.mxu0 %v2068
        %2105 = vmatpush1.msra.mxu0 %v2067
        %2106 = vmatprep.subr.mxu0 %v2070
        %2107 = vmatpush1.msra.mxu0 %v2069
        %2108 = vmatprep.subr.mxu0 %v2072
        %2109 = vmatpush1.msra.mxu0 %v2071
        %2110 = vmatprep.subr.mxu0 %v2074
        %2111 = vmatpush1.msra.mxu0 %v2073
        %2112 = vmatprep.subr.mxu0 0.0
        %2113 = vmatpush1.msra.mxu0 0.0
        %2114 = vmatprep.subr.mxu0 0.0
        %2115 = vmatpush1.msra.mxu0 0.0
        %2116 = vmatprep.subr.mxu0 0.0
        %2117 = vmatpush1.msra.mxu0 0.0
        %2118 = vmatprep.subr.mxu0 0.0
        %2119 = vmatpush1.msra.mxu0 0.0
        %2120 = vmatprep.subr.mxu0 0.0
        %2121 = vmatpush1.msra.mxu0 0.0
        %2122 = vmatprep.subr.mxu0 0.0
        %2123 = vmatpush1.msra.mxu0 0.0
        %2124 = vmatprep.subr.mxu0 0.0
        %2125 = vmatpush1.msra.mxu0 0.0
        %2126 = vmatprep.subr.mxu0 0.0
        %2127 = vmatpush1.msra.mxu0 0.0
        %2128 = vmatprep.subr.mxu0 0.0
        %2129 = vmatpush1.msra.mxu0 0.0
        %2130 = vmatprep.subr.mxu0 0.0
        %2131 = vmatpush1.msra.mxu0 0.0
        %2132 = vmatprep.subr.mxu0 0.0
        %2133 = vmatpush1.msra.mxu0 0.0
        %2134 = vmatprep.subr.mxu0 0.0
        %2135 = vmatpush1.msra.mxu0 0.0
        %2136 = vmatprep.subr.mxu0 0.0
        %2137 = vmatpush1.msra.mxu0 0.0
        %2138 = vmatprep.subr.mxu0 0.0
        %2139 = vmatpush1.msra.mxu0 0.0
        %2140 = vmatprep.subr.mxu0 0.0
        %2141 = vmatpush1.msra.mxu0 0.0
        %2142 = vmatprep.subr.mxu0 0.0
        %2143 = vmatpush1.msra.mxu0 0.0
        %2144 = vmatprep.subr.mxu0 0.0
        %2145 = vmatpush1.msra.mxu0 0.0
        %2146 = vmatprep.subr.mxu0 0.0
        %2147 = vmatpush1.msra.mxu0 0.0
        %2148 = vmatprep.subr.mxu0 0.0
        %2149 = vmatpush1.msra.mxu0 0.0
        %2150 = vmatprep.subr.mxu0 0.0
        %2151 = vmatpush1.msra.mxu0 0.0
        %2152 = vmatprep.subr.mxu0 0.0
        %2153 = vmatpush1.msra.mxu0 0.0
        %2154 = vmatprep.subr.mxu0 0.0
        %2155 = vmatpush1.msra.mxu0 0.0
        %2156 = vmatprep.subr.mxu0 0.0
        %2157 = vmatpush1.msra.mxu0 0.0
        %2158 = vmatprep.subr.mxu0 0.0
        %2159 = vmatpush1.msra.mxu0 0.0
        %2160 = vmatprep.mubr.f32.mxu0 0.0
        %2161 = vmatmul.mubr.f32.gmra.mrb[0].mxu0 %v2091
        %v2162 = vpop.f32.mrb[0].mxu0
        %v2163 = vadd.f32 %v2082, %v2162
        %v2164 = vpop.f32.mrb[0].mxu0
        %v2165 = vadd.f32 %v2082, %v2164
        %2166 = vmatprep.mubr.f32.mxu0 0.0
        %2167 = vmatmul.mubr.f32.gmra.mrb[0].mxu0 %v2094
        %v2168 = vpop.f32.mrb[0].mxu0
        %v2169 = vadd.f32 %v2087, %v2168
        %v2170 = vpop.f32.mrb[0].mxu0
        %v2171 = vadd.f32 %v2087, %v2170
        %2172 = vdwg.mxu0
        %v2173 = vadd.f32 %v2163, %v2165
        %2174 = vadd.xlane.f32.xlu0 %v2173
        %v2175 = vpop.xlane.xlu0 %2174
        %v2176 = vadd.f32 %v2169, %v2171
        %2177 = vadd.xlane.f32.xlu0 %v2176
        %v2178 = vpop.xlane.xlu0 %2177
        %v2179 = vmul.f32 %v2175, 0.00390625
        %v2180 = vmul.f32 %v2178, 0.00390625
        %v2181 = vld [vmem:[%s8] sm:$0xff]
        %v2182 = vld [vmem:[%s8 + $0x8] sm:$0xff]
        %v2183 = vmul.f32 %v2181, %v2179
        %v2184 = vmul.f32 %v2182, %v2180
        %vm2185 = vcmask 31744
        %v2186 = vsel %vm2185, %v2183, 0.0
        %v2187 = vsel %vm2185, %v2184, 0.0
        %v2188 = vadd.f32 %v2186, %v2187
        %v2189 = vrot.slane %v2188, 4
        %v2190 = vadd.f32 %v2188, %v2189
        %v2191 = vrot.slane %v2190, 2
        %v2192 = vadd.f32 %v2190, %v2191
        %v2193 = vrot.slane %v2192, 1
        %v2194 = vadd.f32 %v2192, %v2193
        %v2195 = vld [vmem:[%s9] sm:$0x1]
        %v2196 = vadd.f32 %v2194, %v2195
        %v2197 = vmax.f32 %v2196, 0.0
        %v2198 = vmin.f32 %v2197, 6.0
        %v2199 = vld [vmem:[%s10] sm:$0xff]
        %v2200 = vld [vmem:[%s10 + $0x8] sm:$0xff]
        %v2201 = vlaneseq
        %v2202 = vshrl.u32 %v2201, 7
        %v2203 = vsub.s32 0, %v2202
        %v2204 = vrot.slane %v2198, %v2203
        %v2205 = vmul.f32 %v2199, %v2204
        %v2206 = vmul.f32 %v2200, %v2204
        %v2207 = vsel %vm2185, %v2205, 0.0
        %2208 = vadd.xlane.f32.xlu0 %v2207
        %v2209 = vpop.xlane.xlu0 %2208
        %v2210 = vsel %vm2185, %v2206, 0.0
        %2211 = vadd.xlane.f32.xlu0 %v2210
        %v2212 = vpop.xlane.xlu0 %2211
        %v2213 = vld [vmem:[%s11] sm:$0xff]
        %v2214 = vld [vmem:[%s11 + $0x8] sm:$0xff]
        %v2215 = vadd.f32 %v2209, %v2213
        %v2216 = vadd.f32 %v2212, %v2214
        %v2217 = vxor.u32 %v2215, 2147483648
        %v2218 = vxor.u32 %v2216, 2147483648
        %v2219 = vmul.f32 %v2217, 1.442695
        %v2220 = vpow.pop %v2219
        %v2221 = vmul.f32 %v2218, 1.442695
        %v2222 = vpow.pop %v2221
        %v2223 = vadd.f32 %v2220, 1.0
        %v2224 = vadd.f32 %v2222, 1.0
        %v2225 = vrcp.pop %v2223
        %v2226 = vmul.f32 1.0, %v2225
        %v2227 = vrcp.pop %v2224
        %v2228 = vmul.f32 1.0, %v2227
        %2230 = vset.pattern.permute.xlu0 0
        %2231 = vperm.xlu0 %2230, %v2226
        %v2232 = vpop.permute.xlu0 %2231
        %2235 = vset.pattern.permute.xlu0 0
        %2236 = vperm.xlu0 %2235, %v2228
        %v2237 = vpop.permute.xlu0 %2236
        %v2239 = vmul.f32 %v2163, %v2232
        %v2240 = vmul.f32 %v2165, %v2232
        %v2241 = vmul.f32 %v2169, %v2237
        %v2242 = vmul.f32 %v2171, %v2237
        %v2243 = vadd.f32 %v2239, %v412
        %v2244 = vadd.f32 %v2240, %v413
        %v2245 = vadd.f32 %v2241, %v414
        %v2246 = vadd.f32 %v2242, %v415
        %2247 = vst [vmem:[%s406] sm:$0xff] %v2243
        %2248 = vst [vmem:[%s406 + $0x8] sm:$0xff] %v2244
        %2249 = vst [vmem:[%s406 + $0x10] sm:$0xff] %v2245
        %2250 = vst [vmem:[%s406 + $0x18] sm:$0xff] %v2246
        %s2251 = sand.u32 %s291, 1
        %s2252 = scalar_lea.sflag [#allocation3], %s2251
        %s2253 = sand.u32 %s291, 1
        %s2254 = smul.addr %s2253, 32
        %s2255 = scalar_lea.vmem [#allocation2], %s2254
        // Predicated region
        $region69: #{tpu_custom_call.1} parent=67 // pred_check
          %p2256 = pneg %p301
        $region70: #{tpu_custom_call.1} parent=67 // pred_check_branch
          %2258 = sbr.rel (%p2256) target = $region72
        $region71: #{tpu_custom_call.1} parent=67 // pred_region
          %s2260 = ssub.s32 512, 512
          %2261 = vsyncadd %s2252, %s2260
          %s2262 = smul.addr %s26, 4
          %s2263 = smul.addr %s2262, 128
          %s2264 = scalar_lea.hbm %s12, %s2263
          %s2265 = sshll.u32 %s2255, 4
          %s2266 = int_to_ptr.vmem [resolvable:$true] %s2265
          %2271 = dma.vmem_to_hbm [thread:$0]  %s2266, 512, %s2264, %s2252, 256, 256, 16
        $region72: #{tpu_custom_call.1} parent=67 // pred_fallthru
          _
      $region68: #{tpu_custom_call.1} parent=5 // pred_fallthru
        _
      %p2272 = scmp.le.s32.totalorder 2, %s21
      // Predicated region
      $region73: #{tpu_custom_call.1} parent=5 // pred_check
        %p2273 = pneg %p2272
      $region74: #{tpu_custom_call.1} parent=5 // pred_check_branch
        %2275 = sbr.rel (%p2273) target = $region76
      $region75: #{tpu_custom_call.1} parent=5 // pred_region
        %s2276 = ssub.s32 %s21, 2
        // Predicated region
        $region77: #{tpu_custom_call.1} parent=75 // pred_check
          %p2277 = pneg %p307
        $region78: #{tpu_custom_call.1} parent=75 // pred_check_branch
          %2279 = sbr.rel (%p2277) target = $region80
        $region79: #{tpu_custom_call.1} parent=75 // pred_region
          %s2280 = sand.u32 %s292, 1
          %s2281 = scalar_lea.sflag [#allocation3], %s2280
          %s2282 = sand.u32 %s292, 1
          %s2283 = smul.addr %s2282, 32
          %s2284 = scalar_lea.vmem [#allocation2], %s2283
          %2285 = dma.done %s2281, 512
        $region80: #{tpu_custom_call.1} parent=75 // pred_fallthru
          _
      $region76: #{tpu_custom_call.1} parent=5 // pred_fallthru
        _
    $region6: #{tpu_custom_call.1} parent=1 // loop_footer
      %s25 = sadd.s32 1, %s21
    $region7: #{tpu_custom_call.1} parent=1 // loop_footer_branch
      %20 = sbr.rel target = $region3
    $region8: #{tpu_custom_call.1} parent=1 // loop_exit
      _
    %2286 = vsyncpa [#allocation3], 1
    %s2287 = scalar_lea.sflag [#allocation3], 1
    %2288 = vsyncpa %s2287, 1

</llo_original>
